<compile_context>
chip_gen: v7x
topology: tpu7x:2x2x1
jax: 0.10.0
libtpu: 0.0.40
codegen_flags: <defaults>
</compile_context>

<pallas_src>
import jax
import jax.numpy as jnp
from jax.experimental import pallas as pl
from jax.experimental.pallas import tpu as pltpu

DROP_P = 0.1  # F.dropout(p=0.1), training=True semantics by default.


def _keep_threshold_u32(drop_p):
    keep_prob = 1.0 - drop_p
    return min(2**32 - 1, int(round(keep_prob * 4294967296.0)))


def _dropout_bits(rng, b, n):
    return jax.random.bits(rng, (b, n, n), dtype=jnp.uint32)


def _make_sa_kernel(c, c8, drop_p):
    """Builds the flash-style SA kernel; dropout branch is compiled in only if drop_p > 0."""
    use_dropout = drop_p > 0.0
    if use_dropout:
        keep_thresh = _keep_threshold_u32(drop_p)
        inv_keep = 1.0 / (1.0 - drop_p)

    def kernel(*refs):
        if use_dropout:
            (gamma_ref, xq_ref, xkv_ref, wq_ref, bq_ref, wvk_ref, bvk_ref,
             bits_ref, o_ref, q_s, m_s, l_s, acc_s) = refs
        else:
            (gamma_ref, xq_ref, xkv_ref, wq_ref, bq_ref, wvk_ref, bvk_ref,
             o_ref, q_s, m_s, l_s, acc_s) = refs
            bits_ref = None

        ki = pl.program_id(2)

        @pl.when(ki == 0)
        def _init():
            # Query projection for this (b, qi) tile -- computed once, reused
            # across all kv steps.  (tq, C) @ (C, C8)
            q_s[...] = (jnp.dot(xq_ref[...], wq_ref[...],
                                preferred_element_type=jnp.float32) + bq_ref[...])
            m_s[...] = jnp.full(m_s.shape, -jnp.inf, jnp.float32)
            l_s[...] = jnp.zeros(l_s.shape, jnp.float32)
            acc_s[...] = jnp.zeros(acc_s.shape, jnp.float32)

        # Fused V|K projection of the key/value tile: (tk, C) @ (C, C + C8).
        vk = (jnp.dot(xkv_ref[...], wvk_ref[...],
                      preferred_element_type=jnp.float32) + bvk_ref[...])
        v = vk[:, :c]          # (tk, C)   -- prefix slice, cheap
        k = vk[:, c:]          # (tk, C8)  -- tiny suffix slice

        # energy[i, j] = q_i . k_j : contract the feature dim directly
        # (no k.T materialization / XLU transpose).
        s = jax.lax.dot_general(q_s[...], k, (((1,), (1,)), ((), ())),
                                preferred_element_type=jnp.float32)   # (tq, tk)

        # Online softmax update (all in f32).
        m_prev = m_s[...]
        m_new = jnp.maximum(m_prev, jnp.max(s, axis=-1, keepdims=True))
        alpha = jnp.exp(m_prev - m_new)
        p = jnp.exp(s - m_new)
        # Denominator uses the UNdropped probabilities (PyTorch drops after softmax).
        l_s[...] = alpha * l_s[...] + jnp.sum(p, axis=-1, keepdims=True)

        if use_dropout:
            # Integer threshold on raw uint32 bits: keep iff bits < (1-p) * 2^32.
            keep = bits_ref[...] < jnp.uint32(keep_thresh)
            p = jnp.where(keep, p * jnp.float32(inv_keep), 0.0)

        acc_s[...] = alpha * acc_s[...] + jnp.dot(p, v,
                                                  preferred_element_type=jnp.float32)
        m_s[...] = m_new

        @pl.when(ki == pl.num_programs(2) - 1)
        def _finalize():
            # Normalization is now only a (tq, 1) reciprocal broadcast over (tq, C),
            # not an (N, N) divide; a plain f32 reciprocal is negligible here.
            out = acc_s[...] * (1.0 / l_s[...])
            o_ref[...] = (gamma_ref[0] * out + xq_ref[...]).astype(o_ref.dtype)

    return kernel


def sa_module_forward(x_nchw, params, *, dropout_rng=None, drop_p=DROP_P,
                      block_q=128, block_k=128):
    """x_nchw: (B, C, H, W) float32. Returns (B, C, H, W).

    drop_p > 0 reproduces F.dropout(p, training=True); drop_p == 0 is the eval path.
    """
    Wq, bq, Wk, bk, Wv, bv, gamma = params
    B, C, H, W = x_nchw.shape
    N = H * W
    C8 = C // 8
    use_dropout = drop_p > 0.0
    if use_dropout and dropout_rng is None:
        raise ValueError("dropout_rng is required when drop_p > 0")

    # Tile sizes (fall back to full N when it does not divide evenly).
    tq = block_q if N % block_q == 0 else N
    tk = block_k if N % block_k == 0 else N
    nq, nk = N // tq, N // tk

    # NCHW -> (B, N, C) channels-last (same spatial flattening as .view(B, C, H*W)).
    x_flat = jnp.transpose(x_nchw.reshape(B, C, N), (0, 2, 1)).astype(jnp.float32)

    # Conv2d 1x1 weights (Cout, Cin, 1, 1) -> (Cin, Cout); fuse V and K projections.
    wq_t = Wq.reshape(C8, C).T                                        # (C, C8)
    bq2 = bq.reshape(1, C8)
    wvk_t = jnp.concatenate([Wv.reshape(C, C).T, Wk.reshape(C8, C).T], axis=1)  # (C, C+C8)
    bvk2 = jnp.concatenate([bv, bk]).reshape(1, C + C8)
    gamma_s = gamma.reshape(1).astype(jnp.float32)

    smem_spec = pl.BlockSpec(memory_space=pltpu.MemorySpace.SMEM)
    in_specs = [
        smem_spec,                                                     # gamma (scalar)
        pl.BlockSpec((None, tq, C), lambda b, qi, ki: (b, qi, 0)),     # x (query tile)
        pl.BlockSpec((None, tk, C), lambda b, qi, ki: (b, ki, 0)),     # x (key/value tile)
        pl.BlockSpec((C, C8), lambda b, qi, ki: (0, 0)),               # Wq^T
        pl.BlockSpec((1, C8), lambda b, qi, ki: (0, 0)),               # bq
        pl.BlockSpec((C, C + C8), lambda b, qi, ki: (0, 0)),           # [Wv^T | Wk^T]
        pl.BlockSpec((1, C + C8), lambda b, qi, ki: (0, 0)),           # [bv | bk]
    ]
    inputs = [gamma_s, x_flat, x_flat, wq_t, bq2, wvk_t, bvk2]
    if use_dropout:
        bits = _dropout_bits(dropout_rng, B, N)                        # (B, N, N) uint32
        in_specs.append(pl.BlockSpec((None, tq, tk), lambda b, qi, ki: (b, qi, ki)))
        inputs.append(bits)

    grid_spec = pltpu.PrefetchScalarGridSpec(
        num_scalar_prefetch=0,
        grid=(B, nq, nk),
        in_specs=in_specs,
        out_specs=pl.BlockSpec((None, tq, C), lambda b, qi, ki: (b, qi, 0)),
        scratch_shapes=[
            pltpu.VMEM((tq, C8), jnp.float32),   # cached Q projection
            pltpu.VMEM((tq, 1), jnp.float32),    # running max m
            pltpu.VMEM((tq, 1), jnp.float32),    # running denom l
            pltpu.VMEM((tq, C), jnp.float32),    # output accumulator
        ],
    )

    flops = 2 * B * (N * C * C8 + N * C * (C + C8) + N * N * C8 + N * N * C)
    bytes_accessed = 4 * (3 * B * N * C + C * (C + 2 * C8)
                          + (B * N * N if use_dropout else 0))
    cost = pl.CostEstimate(flops=flops, transcendentals=B * N * N,
                           bytes_accessed=bytes_accessed)

    out_flat = pl.pallas_call(
        _make_sa_kernel(C, C8, drop_p),
        out_shape=jax.ShapeDtypeStruct((B, N, C), jnp.float32),
        grid_spec=grid_spec,
        compiler_params=pltpu.CompilerParams(
            dimension_semantics=("parallel", "parallel", "arbitrary")),
        cost_estimate=cost,
    )(*inputs)

    # (B, N, C) -> NCHW
    return jnp.transpose(out_flat, (0, 2, 1)).reshape(B, C, H, W)


def sa_reference(x_nchw, params, dropout_rng=None, drop_p=DROP_P):
    """Pure-JAX reference mirroring the PyTorch SA_Module forward (same dropout bits)."""
    Wq, bq, Wk, bk, Wv, bv, gamma = params
    B, C, H, W = x_nchw.shape
    N = H * W
    C8 = C // 8
    x = x_nchw.reshape(B, C, N).astype(jnp.float32)
    q = jnp.einsum('oc,bcn->bon', Wq.reshape(C8, C), x) + bq[None, :, None]
    k = jnp.einsum('oc,bcn->bon', Wk.reshape(C8, C), x) + bk[None, :, None]
    v = jnp.einsum('oc,bcn->bon', Wv.reshape(C, C), x) + bv[None, :, None]
    energy = jnp.einsum('bci,bcj->bij', q, k)                 # torch.bmm(Q^T, K)
    att = jax.nn.softmax(energy, axis=-1)
    if drop_p > 0.0:
        bits = _dropout_bits(dropout_rng, B, N)
        keep = bits < jnp.uint32(_keep_threshold_u32(drop_p))
        att = jnp.where(keep, att / (1.0 - drop_p), 0.0)
    out = jnp.einsum('bcj,bij->bci', v, att)                  # torch.bmm(V, att^T)
    return gamma.reshape(()) * out.reshape(B, C, H, W) + x_nchw


def init_params(key, in_dim):
    """Deterministic synthetic init matching SA_Module.__init__ shapes."""
    c8 = in_dim // 8
    ks = jax.random.split(key, 6)
    scale = 1.0 / jnp.sqrt(in_dim)
    Wq = jax.random.normal(ks[0], (c8, in_dim, 1, 1), jnp.float32) * scale
    bq = jax.random.normal(ks[1], (c8,), jnp.float32) * 0.01
    Wk = jax.random.normal(ks[2], (c8, in_dim, 1, 1), jnp.float32) * scale
    bk = jax.random.normal(ks[3], (c8,), jnp.float32) * 0.01
    Wv = jax.random.normal(ks[4], (in_dim, in_dim, 1, 1), jnp.float32) * scale
    bv = jax.random.normal(ks[5], (in_dim,), jnp.float32) * 0.01
    gamma = jnp.zeros((1,), jnp.float32)  # nn.Parameter(torch.zeros(1))
    return (Wq, bq, Wk, bk, Wv, bv, gamma)


if __name__ == "__main__":
    B, C, H, W = 2, 64, 16, 16   # in_dim=64 (divisible by 8), N = 256 -> grid (2, 2, 2)
    key = jax.random.PRNGKey(0)
    kx, kp, kd = jax.random.split(key, 3)
    x = jax.random.normal(kx, (B, C, H, W), jnp.float32)
    params = init_params(kp, C)

    # Module init has gamma = 0 -> output must equal the input (residual path),
    # regardless of the dropout mask.
    out0 = jax.block_until_ready(sa_module_forward(x, params, dropout_rng=kd))
    assert out0.shape == (B, C, H, W)
    assert jnp.allclose(out0, x, atol=1e-5), "gamma=0 residual check failed"

    # Nonzero gamma: compare against the pure-JAX reference using the SAME dropout bits.
    params_nz = params[:-1] + (jnp.array([0.5], jnp.float32),)
    out_nz = jax.block_until_ready(sa_module_forward(x, params_nz, dropout_rng=kd))
    ref_nz = sa_reference(x, params_nz, dropout_rng=kd)
    err = float(jnp.max(jnp.abs(out_nz - ref_nz)))
    assert jnp.allclose(out_nz, ref_nz, atol=1e-3, rtol=1e-3), f"train-path mismatch {err}"

    # Eval path (dropout disabled).
    out_ev = jax.block_until_ready(sa_module_forward(x, params_nz, drop_p=0.0))
    ref_ev = sa_reference(x, params_nz, drop_p=0.0)
    err = float(jnp.max(jnp.abs(out_ev - ref_ev)))
    assert jnp.allclose(out_ev, ref_ev, atol=1e-3, rtol=1e-3), f"eval-path mismatch {err}"

    print("KERNEL_OK")
</pallas_src>

<mosaic_0001>
module attributes {stable_mosaic.version = 11 : i64} {
  func.func @kernel(%arg0: i32, %arg1: i32, %arg2: i32, %arg3: memref<1xf32, #tpu.memory_space<smem>>, %arg4: memref<1x128x64xf32, #tpu.memory_space<vmem>>, %arg5: memref<1x128x64xf32, #tpu.memory_space<vmem>>, %arg6: memref<64x8xf32, #tpu.memory_space<vmem>>, %arg7: memref<1x8xf32, #tpu.memory_space<vmem>>, %arg8: memref<64x72xf32, #tpu.memory_space<vmem>>, %arg9: memref<1x72xf32, #tpu.memory_space<vmem>>, %arg10: memref<1x128x128xi32, #tpu.memory_space<vmem>>, %arg11: memref<1x128x64xf32, #tpu.memory_space<vmem>>, %arg12: memref<128x8xf32, #tpu.memory_space<vmem>>, %arg13: memref<128x1xf32, #tpu.memory_space<vmem>>, %arg14: memref<128x1xf32, #tpu.memory_space<vmem>>, %arg15: memref<128x64xf32, #tpu.memory_space<vmem>>) attributes {dimension_semantics = [#tpu.dimension_semantics<parallel>, #tpu.dimension_semantics<parallel>, #tpu.dimension_semantics<arbitrary>], iteration_bounds = array<i64: 2, 2, 2>, scalar_prefetch = 0 : i64, scratch_operands = 4 : i64, tpu.core_type = #tpu.core_type<tc>, window_params = [{transform_indices = @transform_0, window_bounds = array<i64: 1>}, {transform_indices = @transform_1, window_bounds = array<i64: 1, 128, 64>}, {transform_indices = @transform_2, window_bounds = array<i64: 1, 128, 64>}, {pipeline_mode = #tpu.pipeline_mode<synchronous>, transform_indices = @transform_3, window_bounds = array<i64: 64, 8>}, {pipeline_mode = #tpu.pipeline_mode<synchronous>, transform_indices = @transform_4, window_bounds = array<i64: 1, 8>}, {pipeline_mode = #tpu.pipeline_mode<synchronous>, transform_indices = @transform_5, window_bounds = array<i64: 64, 72>}, {pipeline_mode = #tpu.pipeline_mode<synchronous>, transform_indices = @transform_6, window_bounds = array<i64: 1, 72>}, {transform_indices = @transform_7, window_bounds = array<i64: 1, 128, 128>}, {transform_indices = @transform_8, window_bounds = array<i64: 1, 128, 64>}]} {
    %c0_i32 = arith.constant 0 : i32
    %0 = arith.cmpi eq, %arg2, %c0_i32 : i32
    %1 = arith.extui %0 : i1 to i32
    %c0_i32_0 = arith.constant 0 : i32
    %2 = arith.cmpi ne, %1, %c0_i32_0 : i32
    scf.if %2 {
      %c0_31 = arith.constant 0 : index
      %c0_32 = arith.constant 0 : index
      %c0_33 = arith.constant 0 : index
      %47 = vector.load %arg4[%c0_31, %c0_32, %c0_33] : memref<1x128x64xf32, #tpu.memory_space<vmem>>, vector<1x128x64xf32>
      %48 = vector.shape_cast %47 : vector<1x128x64xf32> to vector<128x64xf32>
      %c0_34 = arith.constant 0 : index
      %c0_35 = arith.constant 0 : index
      %49 = vector.load %arg6[%c0_34, %c0_35] : memref<64x8xf32, #tpu.memory_space<vmem>>, vector<64x8xf32>
      %cst_36 = arith.constant dense<0.000000e+00> : vector<128x8xf32>
      %50 = tpu.matmul %48, %49, %cst_36 {dimension_numbers = #tpu.dot_dimension_numbers<[1], [0], [0], [1], [0, 0, 1, 1], [], []>} : vector<128x64xf32>, vector<64x8xf32>, vector<128x8xf32> -> vector<128x8xf32>
      %c0_37 = arith.constant 0 : index
      %c0_38 = arith.constant 0 : index
      %51 = vector.load %arg7[%c0_37, %c0_38] : memref<1x8xf32, #tpu.memory_space<vmem>>, vector<1x8xf32>
      %52 = vector.broadcast %51 : vector<1x8xf32> to vector<128x8xf32>
      %53 = arith.addf %50, %52 : vector<128x8xf32>
      %c0_39 = arith.constant 0 : index
      %c0_40 = arith.constant 0 : index
      %54 = vector.load %arg12[%c0_39, %c0_40] : memref<128x8xf32, #tpu.memory_space<vmem>>, vector<128x8xf32>
      tpu.vector_store %arg12[%c0_39, %c0_40], %53 {strides = array<i32>} : memref<128x8xf32, #tpu.memory_space<vmem>>, vector<128x8xf32>,
      %cst_41 = arith.constant 0xFF800000 : f32
      %55 = vector.broadcast %cst_41 : f32 to vector<128x1xf32>
      %c0_42 = arith.constant 0 : index
      %c0_43 = arith.constant 0 : index
      %56 = vector.load %arg13[%c0_42, %c0_43] : memref<128x1xf32, #tpu.memory_space<vmem>>, vector<128x1xf32>
      tpu.vector_store %arg13[%c0_42, %c0_43], %55 {strides = array<i32>} : memref<128x1xf32, #tpu.memory_space<vmem>>, vector<128x1xf32>,
      %cst_44 = arith.constant 0.000000e+00 : f32
      %57 = vector.broadcast %cst_44 : f32 to vector<128x1xf32>
      %c0_45 = arith.constant 0 : index
      %c0_46 = arith.constant 0 : index
      %58 = vector.load %arg14[%c0_45, %c0_46] : memref<128x1xf32, #tpu.memory_space<vmem>>, vector<128x1xf32>
      tpu.vector_store %arg14[%c0_45, %c0_46], %57 {strides = array<i32>} : memref<128x1xf32, #tpu.memory_space<vmem>>, vector<128x1xf32>,
      %cst_47 = arith.constant 0.000000e+00 : f32
      %59 = vector.broadcast %cst_47 : f32 to vector<128x64xf32>
      %c0_48 = arith.constant 0 : index
      %c0_49 = arith.constant 0 : index
      %60 = vector.load %arg15[%c0_48, %c0_49] : memref<128x64xf32, #tpu.memory_space<vmem>>, vector<128x64xf32>
      tpu.vector_store %arg15[%c0_48, %c0_49], %59 {strides = array<i32>} : memref<128x64xf32, #tpu.memory_space<vmem>>, vector<128x64xf32>,
    } else {
    }
    %c0 = arith.constant 0 : index
    %c0_1 = arith.constant 0 : index
    %c0_2 = arith.constant 0 : index
    %3 = vector.load %arg5[%c0, %c0_1, %c0_2] : memref<1x128x64xf32, #tpu.memory_space<vmem>>, vector<1x128x64xf32>
    %4 = vector.shape_cast %3 : vector<1x128x64xf32> to vector<128x64xf32>
    %c0_3 = arith.constant 0 : index
    %c0_4 = arith.constant 0 : index
    %5 = vector.load %arg8[%c0_3, %c0_4] : memref<64x72xf32, #tpu.memory_space<vmem>>, vector<64x72xf32>
    %cst = arith.constant dense<0.000000e+00> : vector<128x72xf32>
    %6 = tpu.matmul %4, %5, %cst {dimension_numbers = #tpu.dot_dimension_numbers<[1], [0], [0], [1], [0, 0, 1, 1], [], []>} : vector<128x64xf32>, vector<64x72xf32>, vector<128x72xf32> -> vector<128x72xf32>
    %c0_5 = arith.constant 0 : index
    %c0_6 = arith.constant 0 : index
    %7 = vector.load %arg9[%c0_5, %c0_6] : memref<1x72xf32, #tpu.memory_space<vmem>>, vector<1x72xf32>
    %8 = vector.broadcast %7 : vector<1x72xf32> to vector<128x72xf32>
    %9 = arith.addf %6, %8 : vector<128x72xf32>
    %10 = vector.extract_strided_slice %9 {offsets = [0, 0], sizes = [128, 64], strides = [1, 1]} : vector<128x72xf32> to vector<128x64xf32>
    %11 = vector.extract_strided_slice %9 {offsets = [0, 64], sizes = [128, 8], strides = [1, 1]} : vector<128x72xf32> to vector<128x8xf32>
    %c0_7 = arith.constant 0 : index
    %c0_8 = arith.constant 0 : index
    %12 = vector.load %arg12[%c0_7, %c0_8] : memref<128x8xf32, #tpu.memory_space<vmem>>, vector<128x8xf32>
    %cst_9 = arith.constant dense<0.000000e+00> : vector<128x128xf32>
    %13 = tpu.matmul %12, %11, %cst_9 {dimension_numbers = #tpu.dot_dimension_numbers<[1], [1], [0], [0], [0, 0, 1, 0], [], []>} : vector<128x8xf32>, vector<128x8xf32>, vector<128x128xf32> -> vector<128x128xf32>
    %c0_10 = arith.constant 0 : index
    %c0_11 = arith.constant 0 : index
    %14 = vector.load %arg13[%c0_10, %c0_11] : memref<128x1xf32, #tpu.memory_space<vmem>>, vector<128x1xf32>
    %cst_12 = arith.constant dense<0xFF800000> : vector<128xf32>
    %15 = vector.multi_reduction <maximumf>, %13, %cst_12 [1] : vector<128x128xf32> to vector<128xf32>
    %16 = vector.shape_cast %15 : vector<128xf32> to vector<128x1xf32>
    %17 = arith.maximumf %14, %16 : vector<128x1xf32>
    %18 = arith.subf %14, %17 : vector<128x1xf32>
    %19 = math.exp %18 : vector<128x1xf32>
    %20 = vector.broadcast %17 : vector<128x1xf32> to vector<128x128xf32>
    %21 = arith.subf %13, %20 : vector<128x128xf32>
    %22 = math.exp %21 : vector<128x128xf32>
    %c0_13 = arith.constant 0 : index
    %c0_14 = arith.constant 0 : index
    %23 = vector.load %arg14[%c0_13, %c0_14] : memref<128x1xf32, #tpu.memory_space<vmem>>, vector<128x1xf32>
    %24 = arith.mulf %19, %23 : vector<128x1xf32>
    %cst_15 = arith.constant dense<0.000000e+00> : vector<128xf32>
    %25 = vector.multi_reduction <add>, %22, %cst_15 [1] : vector<128x128xf32> to vector<128xf32>
    %26 = vector.shape_cast %25 : vector<128xf32> to vector<128x1xf32>
    %27 = arith.addf %24, %26 : vector<128x1xf32>
    %c0_16 = arith.constant 0 : index
    %c0_17 = arith.constant 0 : index
    %28 = vector.load %arg14[%c0_16, %c0_17] : memref<128x1xf32, #tpu.memory_space<vmem>>, vector<128x1xf32>
    tpu.vector_store %arg14[%c0_16, %c0_17], %27 {strides = array<i32>} : memref<128x1xf32, #tpu.memory_space<vmem>>, vector<128x1xf32>,
    %c0_18 = arith.constant 0 : index
    %c0_19 = arith.constant 0 : index
    %c0_20 = arith.constant 0 : index
    %29 = vector.load %arg10[%c0_18, %c0_19, %c0_20] : memref<1x128x128xi32, #tpu.memory_space<vmem>>, vector<1x128x128xi32>
    %30 = vector.shape_cast %29 : vector<1x128x128xi32> to vector<128x128xi32>
    %c-429496730_i32 = arith.constant -429496730 : i32
    %31 = vector.broadcast %c-429496730_i32 : i32 to vector<128x128xi32>
    %32 = arith.cmpi ult, %30, %31 : vector<128x128xi32>
    %cst_21 = arith.constant 1.11111116 : f32
    %33 = vector.broadcast %cst_21 : f32 to vector<128x128xf32>
    %34 = arith.mulf %22, %33 : vector<128x128xf32>
    %cst_22 = arith.constant 0.000000e+00 : f32
    %35 = vector.broadcast %cst_22 : f32 to vector<128x128xf32>
    %36 = arith.select %32, %34, %35 : vector<128x128xi1>, vector<128x128xf32>
    %c0_23 = arith.constant 0 : index
    %c0_24 = arith.constant 0 : index
    %37 = vector.load %arg15[%c0_23, %c0_24] : memref<128x64xf32, #tpu.memory_space<vmem>>, vector<128x64xf32>
    %38 = vector.broadcast %19 : vector<128x1xf32> to vector<128x64xf32>
    %39 = arith.mulf %38, %37 : vector<128x64xf32>
    %cst_25 = arith.constant dense<0.000000e+00> : vector<128x64xf32>
    %40 = tpu.matmul %36, %10, %cst_25 {dimension_numbers = #tpu.dot_dimension_numbers<[1], [0], [0], [1], [0, 0, 1, 1], [], []>} : vector<128x128xf32>, vector<128x64xf32>, vector<128x64xf32> -> vector<128x64xf32>
    %41 = arith.addf %39, %40 : vector<128x64xf32>
    %c0_26 = arith.constant 0 : index
    %c0_27 = arith.constant 0 : index
    %42 = vector.load %arg15[%c0_26, %c0_27] : memref<128x64xf32, #tpu.memory_space<vmem>>, vector<128x64xf32>
    tpu.vector_store %arg15[%c0_26, %c0_27], %41 {strides = array<i32>} : memref<128x64xf32, #tpu.memory_space<vmem>>, vector<128x64xf32>,
    %c0_28 = arith.constant 0 : index
    %c0_29 = arith.constant 0 : index
    %43 = vector.load %arg13[%c0_28, %c0_29] : memref<128x1xf32, #tpu.memory_space<vmem>>, vector<128x1xf32>
    tpu.vector_store %arg13[%c0_28, %c0_29], %17 {strides = array<i32>} : memref<128x1xf32, #tpu.memory_space<vmem>>, vector<128x1xf32>,
    %c1_i32 = arith.constant 1 : i32
    %44 = arith.cmpi eq, %arg2, %c1_i32 : i32
    %45 = arith.extui %44 : i1 to i32
    %c0_i32_30 = arith.constant 0 : i32
    %46 = arith.cmpi ne, %45, %c0_i32_30 : i32
    scf.if %46 {
      %c0_31 = arith.constant 0 : index
      %c0_32 = arith.constant 0 : index
      %47 = vector.load %arg15[%c0_31, %c0_32] : memref<128x64xf32, #tpu.memory_space<vmem>>, vector<128x64xf32>
      %c0_33 = arith.constant 0 : index
      %c0_34 = arith.constant 0 : index
      %48 = vector.load %arg14[%c0_33, %c0_34] : memref<128x1xf32, #tpu.memory_space<vmem>>, vector<128x1xf32>
      %cst_35 = arith.constant 1.000000e+00 : f32
      %49 = vector.broadcast %cst_35 : f32 to vector<128x1xf32>
      %50 = arith.divf %49, %48 : vector<128x1xf32>
      %51 = vector.broadcast %50 : vector<128x1xf32> to vector<128x64xf32>
      %52 = arith.mulf %47, %51 : vector<128x64xf32>
      %c0_36 = arith.constant 0 : index
      %53 = memref.load %arg3[%c0_36] : memref<1xf32, #tpu.memory_space<smem>>
      %54 = vector.broadcast %53 : f32 to vector<128x64xf32>
      %55 = arith.mulf %54, %52 : vector<128x64xf32>
      %c0_37 = arith.constant 0 : index
      %c0_38 = arith.constant 0 : index
      %c0_39 = arith.constant 0 : index
      %56 = vector.load %arg4[%c0_37, %c0_38, %c0_39] : memref<1x128x64xf32, #tpu.memory_space<vmem>>, vector<1x128x64xf32>
      %57 = vector.shape_cast %56 : vector<1x128x64xf32> to vector<128x64xf32>
      %58 = arith.addf %55, %57 : vector<128x64xf32>
      %c0_40 = arith.constant 0 : index
      %c0_41 = arith.constant 0 : index
      %c0_42 = arith.constant 0 : index
      %59 = vector.load %arg11[%c0_40, %c0_41, %c0_42] : memref<1x128x64xf32, #tpu.memory_space<vmem>>, vector<1x128x64xf32>
      %60 = vector.shape_cast %59 : vector<1x128x64xf32> to vector<128x64xf32>
      %61 = vector.shape_cast %58 : vector<128x64xf32> to vector<1x128x64xf32>
      tpu.vector_store %arg11[%c0_40, %c0_41, %c0_42], %61 {strides = array<i32>} : memref<1x128x64xf32, #tpu.memory_space<vmem>>, vector<1x128x64xf32>,
    } else {
    }
    return
  }
  func.func @transform_0(%arg0: i32, %arg1: i32, %arg2: i32) -> i32 {
    %c0_i32 = arith.constant 0 : i32
    %c0_i32_0 = arith.constant 0 : i32
    return %c0_i32 : i32
  }
  func.func @transform_1(%arg0: i32, %arg1: i32, %arg2: i32) -> (i32, i32, i32) {
    %c0_i32 = arith.constant 0 : i32
    %c0_i32_0 = arith.constant 0 : i32
    return %arg0, %arg1, %c0_i32 : i32, i32, i32
  }
  func.func @transform_2(%arg0: i32, %arg1: i32, %arg2: i32) -> (i32, i32, i32) {
    %c0_i32 = arith.constant 0 : i32
    %c0_i32_0 = arith.constant 0 : i32
    return %arg0, %arg2, %c0_i32 : i32, i32, i32
  }
  func.func @transform_3(%arg0: i32, %arg1: i32, %arg2: i32) -> (i32, i32) {
    %c0_i32 = arith.constant 0 : i32
    %c0_i32_0 = arith.constant 0 : i32
    %c0_i32_1 = arith.constant 0 : i32
    return %c0_i32, %c0_i32_0 : i32, i32
  }
  func.func @transform_4(%arg0: i32, %arg1: i32, %arg2: i32) -> (i32, i32) {
    %c0_i32 = arith.constant 0 : i32
    %c0_i32_0 = arith.constant 0 : i32
    %c0_i32_1 = arith.constant 0 : i32
    return %c0_i32, %c0_i32_0 : i32, i32
  }
  func.func @transform_5(%arg0: i32, %arg1: i32, %arg2: i32) -> (i32, i32) {
    %c0_i32 = arith.constant 0 : i32
    %c0_i32_0 = arith.constant 0 : i32
    %c0_i32_1 = arith.constant 0 : i32
    return %c0_i32, %c0_i32_0 : i32, i32
  }
  func.func @transform_6(%arg0: i32, %arg1: i32, %arg2: i32) -> (i32, i32) {
    %c0_i32 = arith.constant 0 : i32
    %c0_i32_0 = arith.constant 0 : i32
    %c0_i32_1 = arith.constant 0 : i32
    return %c0_i32, %c0_i32_0 : i32, i32
  }
  func.func @transform_7(%arg0: i32, %arg1: i32, %arg2: i32) -> (i32, i32, i32) {
    %c0_i32 = arith.constant 0 : i32
    return %arg0, %arg1, %arg2 : i32, i32, i32
  }
  func.func @transform_8(%arg0: i32, %arg1: i32, %arg2: i32) -> (i32, i32, i32) {
    %c0_i32 = arith.constant 0 : i32
    %c0_i32_0 = arith.constant 0 : i32
    return %arg0, %arg1, %c0_i32 : i32, i32, i32
  }
}

</mosaic_0001>

<llo_original>
// kernel: tpu_custom_call.1
$region0: #{tpu_custom_call.1}
  #allocation0 [shape = 'u32[]', space=smem, size = 0x4, offset = 0x4, fixed_abs, tag = 'smem constant byte address 0x4 - core index']
  #allocation1 [shape = 'u32[144,128]{1,0:T(1,128)}', space=vmem, size = 0x12000, scoped, tag = 'internal scratch']
  #allocation2 [shape = 'f32[128,8]{1,0:T(8,128)}', space=vmem, size = 0x10000, scoped, tag = 'scratch operand']
  #allocation3 [shape = 'f32[128,1]{1,0:T(8,128)}', space=vmem, size = 0x10000, scoped, tag = 'scratch operand']
  #allocation4 [shape = 'f32[128,1]{1,0:T(8,128)}', space=vmem, size = 0x10000, scoped, tag = 'scratch operand']
  #allocation5 [shape = 'f32[128,64]{1,0:T(8,128)}', space=vmem, size = 0x10000, scoped, tag = 'scratch operand']
  #allocation6 [shape = 'f32[1]{0:T(128)S(6)}', space=smem, size = 0x200, scoped, tag = 'scoped memory for tpu_custom_call.1']
  %s0 = inlined_call_operand.<no memory space> [shape: f32[1], index: 0, kind: input, shape index: {}]
  %s1 = inlined_call_operand.vmem [shape: f32[2,256,64], index: 1, kind: input, shape index: {}]
  %s2 = inlined_call_operand.vmem [shape: f32[2,256,64], index: 2, kind: input, shape index: {}]
  %s3 = inlined_call_operand.vmem [shape: f32[64,8], index: 3, kind: input, shape index: {}]
  %s4 = inlined_call_operand.vmem [shape: f32[1,8], index: 4, kind: input, shape index: {}]
  %s5 = inlined_call_operand.vmem [shape: f32[64,72], index: 5, kind: input, shape index: {}]
  %s6 = inlined_call_operand.vmem [shape: f32[1,72], index: 6, kind: input, shape index: {}]
  %s7 = inlined_call_operand.vmem [shape: u32[2,256,256], index: 7, kind: input, shape index: {}]
  %s8 = inlined_call_operand.vmem [shape: f32[2,256,64], index: 8, kind: output, shape index: {}]
  %s9 = sld [smem:[#allocation0]]
  $region111: #{tpu_custom_call.1} parent=0
    _
  %s11 = ssub.s32 1, %s9
  %s12 = scalar_select 0, %s11, %s9
  %13 = sst [smem:[#allocation6]] %s0
  $region1: #{tpu_custom_call.1} parent=0
    #allocation7 [shape = 'u8[131072]{0}', space=vmem, size = 0x20000, scoped, tag = 'input window, operand 7']
    loop: start=0, step=1, limit=10
    $region2: #{tpu_custom_call.1} parent=1 // loop_pre_header
      _
    $region3: #{tpu_custom_call.1} parent=1 // loop_header
      %s15 = sphi 0, %s19
      %p16 = scmp.ge.s32.totalorder %s15, 10
      %s22 = sphi 0, %s41
      %s23 = sphi 0, %s37
      %s24 = sphi 0, %s33
      %s25 = sphi 0, %s22
      %s26 = sphi 0, %s23
      %s27 = sphi 0, %s24
      %s28 = sphi 0, %s25
      %s29 = sphi 0, %s26
      %s30 = sphi 0, %s27
      %s42 = sphi 0, %s42
      %s44 = sphi 0, %s42
      %s45 = sphi 0, %s44
      %s59 = sphi 0, %s45
      %s67 = sphi 0, %s69
      %s70 = sphi 0, %s67
      %s71 = sphi 0, %s70
      %s87 = sphi 0, %s71
      %s95 = sphi 0, %s97
      %s98 = sphi 0, %s95
      %s99 = sphi 0, %s98
      %s115 = sphi 0, %s99
      %s119 = sphi 0, %s119
      %s121 = sphi 0, %s119
      %s122 = sphi 0, %s121
      %s136 = sphi 0, %s122
      %s140 = sphi 0, %s140
      %s142 = sphi 0, %s140
      %s143 = sphi 0, %s142
      %s157 = sphi 0, %s143
      %s161 = sphi 0, %s161
      %s163 = sphi 0, %s161
      %s164 = sphi 0, %s163
      %s178 = sphi 0, %s164
      %s182 = sphi 0, %s182
      %s184 = sphi 0, %s182
      %s185 = sphi 0, %s184
      %s199 = sphi 0, %s185
      %s209 = sphi 0, %s211
      %s212 = sphi 0, %s209
      %s213 = sphi 0, %s212
      %s229 = sphi 0, %s213
      %s237 = sphi 0, %s239
      %s240 = sphi 0, %s237
      %s241 = sphi 0, %s240
      %s257 = sphi 0, %s241
    $region4: #{tpu_custom_call.1} parent=1 // loop_header_branch
      %18 = sbr.rel (%p16) target = $region8
    $region5: #{tpu_custom_call.1} parent=1 // loop_body
      %s20 = ssub.s32 %s15, 1
      %s21 = ssub.s32 %s15, 2
      %s31 = sadd.s32 1, %s24
      %p32 = scmp.ge.s32.totalorder %s31, 2
      %s33 = scalar_select %p32, 0, %s31
      %s34 = sadd.s32 1, %s23
      %s35 = scalar_select %p32, %s34, %s23
      %p36 = scmp.ge.s32.totalorder %s35, 2
      %s37 = scalar_select %p36, 0, %s35
      %s38 = sadd.s32 1, %s22
      %s39 = scalar_select %p36, %s38, %s22
      %p40 = scmp.ge.s32.totalorder %s39, 2
      %s41 = scalar_select %p40, 0, %s39
      %s43 = sadd.s32 %s42, 1
      %p46 = scmp.eq.s32.totalorder %s15, 7
      %p47 = scmp.ne.s32.totalorder %s42, %s44
      %p48 = scmp.eq.s32.totalorder %s15, 0
      %p49 = por %p47, %p48
      %p50 = scmp.ne.s32.totalorder %s42, %s44
      %p51 = scmp.eq.s32.totalorder %s20, 7
      %p52 = por %p50, %p51
      %p53 = scmp.ne.s32.totalorder %s44, %s45
      %p54 = scmp.eq.s32.totalorder %s20, 0
      %p55 = por %p53, %p54
      %p56 = scmp.ne.s32.totalorder %s44, %s45
      %p57 = scmp.eq.s32.totalorder %s21, 7
      %p58 = por %p56, %p57
      %p60 = scmp.ne.s32.totalorder %s45, %s59
      %p61 = scmp.eq.s32.totalorder %s21, 0
      %p62 = por %p60, %p61
      %s63 = ssub.s32 %s22, %s41
      %s64 = ssub.s32 %s23, %s37
      %s65 = sor.u32 %s63, %s64
      %p66 = scmp.eq.s32.totalorder %s65, 0
      %s68 = sadd.s32 %s67, 1
      %s69 = scalar_select %p66, %s67, %s68
      %p72 = pneg %p66
      %p73 = scmp.eq.s32.totalorder %s15, 7
      %p74 = por %p72, %p73
      %p75 = scmp.ne.s32.totalorder %s67, %s70
      %p76 = scmp.eq.s32.totalorder %s15, 0
      %p77 = por %p75, %p76
      %p78 = scmp.ne.s32.totalorder %s67, %s70
      %p79 = scmp.eq.s32.totalorder %s20, 7
      %p80 = por %p78, %p79
      %p81 = scmp.ne.s32.totalorder %s70, %s71
      %p82 = scmp.eq.s32.totalorder %s20, 0
      %p83 = por %p81, %p82
      %p84 = scmp.ne.s32.totalorder %s70, %s71
      %p85 = scmp.eq.s32.totalorder %s21, 7
      %p86 = por %p84, %p85
      %p88 = scmp.ne.s32.totalorder %s71, %s87
      %p89 = scmp.eq.s32.totalorder %s21, 0
      %p90 = por %p88, %p89
      %s91 = ssub.s32 %s22, %s41
      %s92 = ssub.s32 %s24, %s33
      %s93 = sor.u32 %s91, %s92
      %p94 = scmp.eq.s32.totalorder %s93, 0
      %s96 = sadd.s32 %s95, 1
      %s97 = scalar_select %p94, %s95, %s96
      %p100 = pneg %p94
      %p101 = scmp.eq.s32.totalorder %s15, 7
      %p102 = por %p100, %p101
      %p103 = scmp.ne.s32.totalorder %s95, %s98
      %p104 = scmp.eq.s32.totalorder %s15, 0
      %p105 = por %p103, %p104
      %p106 = scmp.ne.s32.totalorder %s95, %s98
      %p107 = scmp.eq.s32.totalorder %s20, 7
      %p108 = por %p106, %p107
      %p109 = scmp.ne.s32.totalorder %s98, %s99
      %p110 = scmp.eq.s32.totalorder %s20, 0
      %p111 = por %p109, %p110
      %p112 = scmp.ne.s32.totalorder %s98, %s99
      %p113 = scmp.eq.s32.totalorder %s21, 7
      %p114 = por %p112, %p113
      %p116 = scmp.ne.s32.totalorder %s99, %s115
      %p117 = scmp.eq.s32.totalorder %s21, 0
      %p118 = por %p116, %p117
      %s120 = sadd.s32 %s119, 1
      %p123 = scmp.eq.s32.totalorder %s15, 7
      %p124 = scmp.ne.s32.totalorder %s119, %s121
      %p125 = scmp.eq.s32.totalorder %s15, 0
      %p126 = por %p124, %p125
      %p127 = scmp.ne.s32.totalorder %s119, %s121
      %p128 = scmp.eq.s32.totalorder %s20, 7
      %p129 = por %p127, %p128
      %p130 = scmp.ne.s32.totalorder %s121, %s122
      %p131 = scmp.eq.s32.totalorder %s20, 0
      %p132 = por %p130, %p131
      %p133 = scmp.ne.s32.totalorder %s121, %s122
      %p134 = scmp.eq.s32.totalorder %s21, 7
      %p135 = por %p133, %p134
      %p137 = scmp.ne.s32.totalorder %s122, %s136
      %p138 = scmp.eq.s32.totalorder %s21, 0
      %p139 = por %p137, %p138
      %s141 = sadd.s32 %s140, 1
      %p144 = scmp.eq.s32.totalorder %s15, 7
      %p145 = scmp.ne.s32.totalorder %s140, %s142
      %p146 = scmp.eq.s32.totalorder %s15, 0
      %p147 = por %p145, %p146
      %p148 = scmp.ne.s32.totalorder %s140, %s142
      %p149 = scmp.eq.s32.totalorder %s20, 7
      %p150 = por %p148, %p149
      %p151 = scmp.ne.s32.totalorder %s142, %s143
      %p152 = scmp.eq.s32.totalorder %s20, 0
      %p153 = por %p151, %p152
      %p154 = scmp.ne.s32.totalorder %s142, %s143
      %p155 = scmp.eq.s32.totalorder %s21, 7
      %p156 = por %p154, %p155
      %p158 = scmp.ne.s32.totalorder %s143, %s157
      %p159 = scmp.eq.s32.totalorder %s21, 0
      %p160 = por %p158, %p159
      %s162 = sadd.s32 %s161, 1
      %p165 = scmp.eq.s32.totalorder %s15, 7
      %p166 = scmp.ne.s32.totalorder %s161, %s163
      %p167 = scmp.eq.s32.totalorder %s15, 0
      %p168 = por %p166, %p167
      %p169 = scmp.ne.s32.totalorder %s161, %s163
      %p170 = scmp.eq.s32.totalorder %s20, 7
      %p171 = por %p169, %p170
      %p172 = scmp.ne.s32.totalorder %s163, %s164
      %p173 = scmp.eq.s32.totalorder %s20, 0
      %p174 = por %p172, %p173
      %p175 = scmp.ne.s32.totalorder %s163, %s164
      %p176 = scmp.eq.s32.totalorder %s21, 7
      %p177 = por %p175, %p176
      %p179 = scmp.ne.s32.totalorder %s164, %s178
      %p180 = scmp.eq.s32.totalorder %s21, 0
      %p181 = por %p179, %p180
      %s183 = sadd.s32 %s182, 1
      %p186 = scmp.eq.s32.totalorder %s15, 7
      %p187 = scmp.ne.s32.totalorder %s182, %s184
      %p188 = scmp.eq.s32.totalorder %s15, 0
      %p189 = por %p187, %p188
      %p190 = scmp.ne.s32.totalorder %s182, %s184
      %p191 = scmp.eq.s32.totalorder %s20, 7
      %p192 = por %p190, %p191
      %p193 = scmp.ne.s32.totalorder %s184, %s185
      %p194 = scmp.eq.s32.totalorder %s20, 0
      %p195 = por %p193, %p194
      %p196 = scmp.ne.s32.totalorder %s184, %s185
      %p197 = scmp.eq.s32.totalorder %s21, 7
      %p198 = por %p196, %p197
      %p200 = scmp.ne.s32.totalorder %s185, %s199
      %p201 = scmp.eq.s32.totalorder %s21, 0
      %p202 = por %p200, %p201
      %s203 = ssub.s32 %s22, %s41
      %s204 = ssub.s32 %s23, %s37
      %s205 = sor.u32 %s203, %s204
      %s206 = ssub.s32 %s24, %s33
      %s207 = sor.u32 %s205, %s206
      %p208 = scmp.eq.s32.totalorder %s207, 0
      %s210 = sadd.s32 %s209, 1
      %s211 = scalar_select %p208, %s209, %s210
      %p214 = pneg %p208
      %p215 = scmp.eq.s32.totalorder %s15, 7
      %p216 = por %p214, %p215
      %p217 = scmp.ne.s32.totalorder %s209, %s212
      %p218 = scmp.eq.s32.totalorder %s15, 0
      %p219 = por %p217, %p218
      %p220 = scmp.ne.s32.totalorder %s209, %s212
      %p221 = scmp.eq.s32.totalorder %s20, 7
      %p222 = por %p220, %p221
      %p223 = scmp.ne.s32.totalorder %s212, %s213
      %p224 = scmp.eq.s32.totalorder %s20, 0
      %p225 = por %p223, %p224
      %p226 = scmp.ne.s32.totalorder %s212, %s213
      %p227 = scmp.eq.s32.totalorder %s21, 7
      %p228 = por %p226, %p227
      %p230 = scmp.ne.s32.totalorder %s213, %s229
      %p231 = scmp.eq.s32.totalorder %s21, 0
      %p232 = por %p230, %p231
      %s233 = ssub.s32 %s22, %s41
      %s234 = ssub.s32 %s23, %s37
      %s235 = sor.u32 %s233, %s234
      %p236 = scmp.eq.s32.totalorder %s235, 0
      %s238 = sadd.s32 %s237, 1
      %s239 = scalar_select %p236, %s237, %s238
      %p242 = pneg %p236
      %p243 = scmp.eq.s32.totalorder %s15, 7
      %p244 = por %p242, %p243
      %p245 = scmp.ne.s32.totalorder %s237, %s240
      %p246 = scmp.eq.s32.totalorder %s15, 0
      %p247 = por %p245, %p246
      %p248 = scmp.ne.s32.totalorder %s237, %s240
      %p249 = scmp.eq.s32.totalorder %s20, 7
      %p250 = por %p248, %p249
      %p251 = scmp.ne.s32.totalorder %s240, %s241
      %p252 = scmp.eq.s32.totalorder %s20, 0
      %p253 = por %p251, %p252
      %p254 = scmp.ne.s32.totalorder %s240, %s241
      %p255 = scmp.eq.s32.totalorder %s21, 7
      %p256 = por %p254, %p255
      %p258 = scmp.ne.s32.totalorder %s241, %s257
      %p259 = scmp.eq.s32.totalorder %s21, 0
      %p260 = por %p258, %p259
      %p261 = scmp.le.s32.totalorder 1, %s15
      %p262 = scmp.lt.s32.totalorder %s15, 9
      %p263 = pnand %p261, %p262
      %p264 = pneg %p263
      // Predicated region
      $region9: #{tpu_custom_call.1} parent=5 // pred_check
        _
      $region10: #{tpu_custom_call.1} parent=5 // pred_check_branch
        %266 = sbr.rel (%p263) target = $region12
      $region11: #{tpu_custom_call.1} parent=5 // pred_region
        %s267 = ssub.s32 %s15, 1
        // Predicated region
        $region13: #{tpu_custom_call.1} parent=11 // pred_check
          %p268 = pneg %p55
        $region14: #{tpu_custom_call.1} parent=11 // pred_check_branch
          %270 = sbr.rel (%p268) target = $region16
        $region15: #{tpu_custom_call.1} parent=11 // pred_region
          _
        $region16: #{tpu_custom_call.1} parent=11 // pred_fallthru
          _
        // Predicated region
        $region17: #{tpu_custom_call.1} parent=11 // pred_check
          %p271 = pneg %p132
        $region18: #{tpu_custom_call.1} parent=11 // pred_check_branch
          %273 = sbr.rel (%p271) target = $region20
        $region19: #{tpu_custom_call.1} parent=11 // pred_region
          _
        $region20: #{tpu_custom_call.1} parent=11 // pred_fallthru
          _
        // Predicated region
        $region21: #{tpu_custom_call.1} parent=11 // pred_check
          %p274 = pneg %p153
        $region22: #{tpu_custom_call.1} parent=11 // pred_check_branch
          %276 = sbr.rel (%p274) target = $region24
        $region23: #{tpu_custom_call.1} parent=11 // pred_region
          _
        $region24: #{tpu_custom_call.1} parent=11 // pred_fallthru
          _
        // Predicated region
        $region25: #{tpu_custom_call.1} parent=11 // pred_check
          %p277 = pneg %p174
        $region26: #{tpu_custom_call.1} parent=11 // pred_check_branch
          %279 = sbr.rel (%p277) target = $region28
        $region27: #{tpu_custom_call.1} parent=11 // pred_region
          _
        $region28: #{tpu_custom_call.1} parent=11 // pred_fallthru
          _
        // Predicated region
        $region29: #{tpu_custom_call.1} parent=11 // pred_check
          %p280 = pneg %p195
        $region30: #{tpu_custom_call.1} parent=11 // pred_check_branch
          %282 = sbr.rel (%p280) target = $region32
        $region31: #{tpu_custom_call.1} parent=11 // pred_region
          _
        $region32: #{tpu_custom_call.1} parent=11 // pred_fallthru
          _
      $region12: #{tpu_custom_call.1} parent=5 // pred_fallthru
        _
      %p283 = scmp.lt.s32.totalorder %s15, 8
      // Predicated region
      $region33: #{tpu_custom_call.1} parent=5 // pred_check
        %p284 = pneg %p283
      $region34: #{tpu_custom_call.1} parent=5 // pred_check_branch
        %286 = sbr.rel (%p284) target = $region36
      $region35: #{tpu_custom_call.1} parent=5 // pred_region
        // Predicated region
        $region37: #{tpu_custom_call.1} parent=35 // pred_check
          %p287 = pneg %p77
        $region38: #{tpu_custom_call.1} parent=35 // pred_check_branch
          %289 = sbr.rel (%p287) target = $region40
        $region39: #{tpu_custom_call.1} parent=35 // pred_region
          %s290 = smul.u32 16, %s23
          %p291 = scmp.lt.s32.totalorder %s22, 1
          %s292 = scalar_select %p291, %s22, 1
          %p293 = scmp.lt.s32.totalorder %s290, 31
          %s294 = scalar_select %p293, %s290, 31
          %s295 = smul.addr %s292, 32
          %s296 = sadd.s32 %s294, %s295
          %s297 = smul.addr %s296, 8
          %s298 = scalar_lea.vmem %s1, %s297
          %s299 = smul.u32 16, %s23
        $region40: #{tpu_custom_call.1} parent=35 // pred_fallthru
          _
        // Predicated region
        $region41: #{tpu_custom_call.1} parent=35 // pred_check
          %p300 = pneg %p105
        $region42: #{tpu_custom_call.1} parent=35 // pred_check_branch
          %302 = sbr.rel (%p300) target = $region44
        $region43: #{tpu_custom_call.1} parent=35 // pred_region
          %s303 = smul.u32 16, %s24
          %p304 = scmp.lt.s32.totalorder %s22, 1
          %s305 = scalar_select %p304, %s22, 1
          %p306 = scmp.lt.s32.totalorder %s303, 31
          %s307 = scalar_select %p306, %s303, 31
          %s308 = smul.addr %s305, 32
          %s309 = sadd.s32 %s307, %s308
          %s310 = smul.addr %s309, 8
          %s311 = scalar_lea.vmem %s2, %s310
          %s312 = smul.u32 16, %s24
        $region44: #{tpu_custom_call.1} parent=35 // pred_fallthru
          _
        // Predicated region
        $region45: #{tpu_custom_call.1} parent=35 // pred_check
          %p313 = pneg %p219
        $region46: #{tpu_custom_call.1} parent=35 // pred_check_branch
          %315 = sbr.rel (%p313) target = $region48
        $region47: #{tpu_custom_call.1} parent=35 // pred_region
          %s316 = sand.u32 %s209, 1
          %s317 = sand.u32 %s209, 1
          %s318 = smul.addr %s317, 128
          %s319 = scalar_lea.vmem [#allocation7], %s318
          %s320 = smul.u32 16, %s23
          %s321 = smul.addr %s320, 2
          %s322 = sadd.s32 %s24, %s321
          %s323 = smul.addr %s22, 64
          %s324 = sadd.s32 %s322, %s323
          %s325 = smul.addr %s324, 8
          %s326 = scalar_lea.vmem %s7, %s325
          // Predicated region
          $region49: #{tpu_custom_call.1} parent=47 // pred_check
            _
          $region50: #{tpu_custom_call.1} parent=47 // pred_check_branch
            %328 = sbr.rel (0) target = $region52
          $region51: #{tpu_custom_call.1} parent=47 // pred_region
            // Predicated region
            $region53: #{tpu_custom_call.1} parent=51 // pred_check
              _
            $region54: #{tpu_custom_call.1} parent=51 // pred_check_branch
              %330 = sbr.rel (0) target = $region56
            $region55: #{tpu_custom_call.1} parent=51 // pred_region
              // Predicated region
              $region68: #{tpu_custom_call.1} parent=55 // pred_check
                _
              $region69: #{tpu_custom_call.1} parent=55 // pred_check_branch
                %375 = sbr.rel (0) target = $region71
              $region70: #{tpu_custom_call.1} parent=55 // pred_region
                loop: start=0, step=1, limit=1
                $region72: #{tpu_custom_call.1} parent=70 // loop_pre_header
                  _
                $region73: #{tpu_custom_call.1} parent=70 // loop_header
                  %s377 = sphi 0, %s381
                  %p378 = scmp.ge.s32.totalorder %s377, 1
                  %s382 = sphi %s326, %s326
                  %s383 = sphi %s319, %s319
                $region74: #{tpu_custom_call.1} parent=70 // loop_header_branch
                  %380 = sbr.rel (%p378) target = $region78
                $region75: #{tpu_custom_call.1} parent=70 // loop_body
                  %v384 = vld [vmem:[%s382] sm:$0xff]
                  %385 = vst [vmem:[%s383] sm:$0xff] %v384
                  %v386 = vld [vmem:[%s382 + $0x10] sm:$0xff]
                  %387 = vst [vmem:[%s383 + $0x8] sm:$0xff] %v386
                  %v388 = vld [vmem:[%s382 + $0x20] sm:$0xff]
                  %389 = vst [vmem:[%s383 + $0x10] sm:$0xff] %v388
                  %v390 = vld [vmem:[%s382 + $0x30] sm:$0xff]
                  %391 = vst [vmem:[%s383 + $0x18] sm:$0xff] %v390
                  %v392 = vld [vmem:[%s382 + $0x40] sm:$0xff]
                  %393 = vst [vmem:[%s383 + $0x20] sm:$0xff] %v392
                  %v394 = vld [vmem:[%s382 + $0x50] sm:$0xff]
                  %395 = vst [vmem:[%s383 + $0x28] sm:$0xff] %v394
                  %v396 = vld [vmem:[%s382 + $0x60] sm:$0xff]
                  %397 = vst [vmem:[%s383 + $0x30] sm:$0xff] %v396
                  %v398 = vld [vmem:[%s382 + $0x70] sm:$0xff]
                  %399 = vst [vmem:[%s383 + $0x38] sm:$0xff] %v398
                  %v400 = vld [vmem:[%s382 + $0x80] sm:$0xff]
                  %401 = vst [vmem:[%s383 + $0x40] sm:$0xff] %v400
                  %v402 = vld [vmem:[%s382 + $0x90] sm:$0xff]
                  %403 = vst [vmem:[%s383 + $0x48] sm:$0xff] %v402
                  %v404 = vld [vmem:[%s382 + $0xa0] sm:$0xff]
                  %405 = vst [vmem:[%s383 + $0x50] sm:$0xff] %v404
                  %v406 = vld [vmem:[%s382 + $0xb0] sm:$0xff]
                  %407 = vst [vmem:[%s383 + $0x58] sm:$0xff] %v406
                  %v408 = vld [vmem:[%s382 + $0xc0] sm:$0xff]
                  %409 = vst [vmem:[%s383 + $0x60] sm:$0xff] %v408
                  %v410 = vld [vmem:[%s382 + $0xd0] sm:$0xff]
                  %411 = vst [vmem:[%s383 + $0x68] sm:$0xff] %v410
                  %v412 = vld [vmem:[%s382 + $0xe0] sm:$0xff]
                  %413 = vst [vmem:[%s383 + $0x70] sm:$0xff] %v412
                  %v414 = vld [vmem:[%s382 + $0xf0] sm:$0xff]
                  %415 = vst [vmem:[%s383 + $0x78] sm:$0xff] %v414
                $region76: #{tpu_custom_call.1} parent=70 // loop_footer
                  %s381 = sadd.s32 1, %s377
                $region77: #{tpu_custom_call.1} parent=70 // loop_footer_branch
                  %376 = sbr.rel target = $region73
                $region78: #{tpu_custom_call.1} parent=70 // loop_exit
                  _
              $region71: #{tpu_custom_call.1} parent=55 // pred_fallthru
                _
              // Predicated region
              $region79: #{tpu_custom_call.1} parent=55 // pred_check
                _
              $region80: #{tpu_custom_call.1} parent=55 // pred_check_branch
                %417 = sbr.rel target = $region82
              $region81: #{tpu_custom_call.1} parent=55 // pred_region
                _
              $region82: #{tpu_custom_call.1} parent=55 // pred_fallthru
                _
            $region56: #{tpu_custom_call.1} parent=51 // pred_fallthru
              _
            // Predicated region
            $region57: #{tpu_custom_call.1} parent=51 // pred_check
              _
            $region58: #{tpu_custom_call.1} parent=51 // pred_check_branch
              %332 = sbr.rel target = $region60
            $region59: #{tpu_custom_call.1} parent=51 // pred_region
              loop: start=0, step=1, limit=1
              $region61: #{tpu_custom_call.1} parent=59 // loop_pre_header
                _
              $region62: #{tpu_custom_call.1} parent=59 // loop_header
                %s335 = sphi 0, %s339
                %p336 = scmp.ge.s32.totalorder %s335, 1
                %s340 = sphi %s326, %s326
                %s341 = sphi %s319, %s319
              $region63: #{tpu_custom_call.1} parent=59 // loop_header_branch
                %338 = sbr.rel (%p336) target = $region67
              $region64: #{tpu_custom_call.1} parent=59 // loop_body
                %v342 = vld [vmem:[%s340] sm:$0xff]
                %343 = vst [vmem:[%s341] sm:$0xff] %v342
                %v344 = vld [vmem:[%s340 + $0x10] sm:$0xff]
                %345 = vst [vmem:[%s341 + $0x8] sm:$0xff] %v344
                %v346 = vld [vmem:[%s340 + $0x20] sm:$0xff]
                %347 = vst [vmem:[%s341 + $0x10] sm:$0xff] %v346
                %v348 = vld [vmem:[%s340 + $0x30] sm:$0xff]
                %349 = vst [vmem:[%s341 + $0x18] sm:$0xff] %v348
                %v350 = vld [vmem:[%s340 + $0x40] sm:$0xff]
                %351 = vst [vmem:[%s341 + $0x20] sm:$0xff] %v350
                %v352 = vld [vmem:[%s340 + $0x50] sm:$0xff]
                %353 = vst [vmem:[%s341 + $0x28] sm:$0xff] %v352
                %v354 = vld [vmem:[%s340 + $0x60] sm:$0xff]
                %355 = vst [vmem:[%s341 + $0x30] sm:$0xff] %v354
                %v356 = vld [vmem:[%s340 + $0x70] sm:$0xff]
                %357 = vst [vmem:[%s341 + $0x38] sm:$0xff] %v356
                %v358 = vld [vmem:[%s340 + $0x80] sm:$0xff]
                %359 = vst [vmem:[%s341 + $0x40] sm:$0xff] %v358
                %v360 = vld [vmem:[%s340 + $0x90] sm:$0xff]
                %361 = vst [vmem:[%s341 + $0x48] sm:$0xff] %v360
                %v362 = vld [vmem:[%s340 + $0xa0] sm:$0xff]
                %363 = vst [vmem:[%s341 + $0x50] sm:$0xff] %v362
                %v364 = vld [vmem:[%s340 + $0xb0] sm:$0xff]
                %365 = vst [vmem:[%s341 + $0x58] sm:$0xff] %v364
                %v366 = vld [vmem:[%s340 + $0xc0] sm:$0xff]
                %367 = vst [vmem:[%s341 + $0x60] sm:$0xff] %v366
                %v368 = vld [vmem:[%s340 + $0xd0] sm:$0xff]
                %369 = vst [vmem:[%s341 + $0x68] sm:$0xff] %v368
                %v370 = vld [vmem:[%s340 + $0xe0] sm:$0xff]
                %371 = vst [vmem:[%s341 + $0x70] sm:$0xff] %v370
                %v372 = vld [vmem:[%s340 + $0xf0] sm:$0xff]
                %373 = vst [vmem:[%s341 + $0x78] sm:$0xff] %v372
              $region65: #{tpu_custom_call.1} parent=59 // loop_footer
                %s339 = sadd.s32 1, %s335
              $region66: #{tpu_custom_call.1} parent=59 // loop_footer_branch
                %334 = sbr.rel target = $region62
              $region67: #{tpu_custom_call.1} parent=59 // loop_exit
                _
            $region60: #{tpu_custom_call.1} parent=51 // pred_fallthru
              _
          $region52: #{tpu_custom_call.1} parent=47 // pred_fallthru
            _
          %418 = vnop
        $region48: #{tpu_custom_call.1} parent=35 // pred_fallthru
          _
      $region36: #{tpu_custom_call.1} parent=5 // pred_fallthru
        _
      %p419 = scmp.le.s32.totalorder 1, %s15
      %p420 = scmp.lt.s32.totalorder %s15, 9
      %p421 = pnand %p419, %p420
      %p422 = pneg %p421
      // Predicated region
      $region83: #{tpu_custom_call.1} parent=5 // pred_check
        _
      $region84: #{tpu_custom_call.1} parent=5 // pred_check_branch
        %424 = sbr.rel (%p421) target = $region86
      $region85: #{tpu_custom_call.1} parent=5 // pred_region
        %s425 = ssub.s32 %s15, 1
        %s426 = sand.u32 %s212, 1
        %s427 = sand.u32 %s212, 1
        %s428 = smul.addr %s427, 128
        %s429 = scalar_lea.vmem [#allocation7], %s428
        // Predicated region
        $region87: #{tpu_custom_call.1} parent=85 // pred_check
          %p430 = pneg %p225
        $region88: #{tpu_custom_call.1} parent=85 // pred_check_branch
          %432 = sbr.rel (%p430) target = $region90
        $region89: #{tpu_custom_call.1} parent=85 // pred_region
          _
        $region90: #{tpu_custom_call.1} parent=85 // pred_fallthru
          _
        %p433 = pneg %p55
        %p434 = pneg %p52
        %s435 = smul.u32 16, %s26
        %p436 = scmp.lt.s32.totalorder %s25, 1
        %s437 = scalar_select %p436, %s25, 1
        %p438 = scmp.lt.s32.totalorder %s435, 31
        %s439 = scalar_select %p438, %s435, 31
        %s440 = smul.addr %s437, 32
        %s441 = sadd.s32 %s439, %s440
        %s442 = smul.addr %s441, 8
        %s443 = scalar_lea.vmem %s1, %s442
        %p444 = pneg %p83
        %p445 = pneg %p80
        %s446 = smul.u32 16, %s27
        %p447 = scmp.lt.s32.totalorder %s25, 1
        %s448 = scalar_select %p447, %s25, 1
        %p449 = scmp.lt.s32.totalorder %s446, 31
        %s450 = scalar_select %p449, %s446, 31
        %s451 = smul.addr %s448, 32
        %s452 = sadd.s32 %s450, %s451
        %s453 = smul.addr %s452, 8
        %s454 = scalar_lea.vmem %s2, %s453
        %p455 = pneg %p111
        %p456 = pneg %p108
        %p457 = pneg %p132
        %p458 = pneg %p129
        %p459 = pneg %p153
        %p460 = pneg %p150
        %p461 = pneg %p174
        %p462 = pneg %p171
        %p463 = pneg %p195
        %p464 = pneg %p192
        %s465 = sand.u32 %s212, 1
        %s466 = sand.u32 %s212, 1
        %s467 = smul.addr %s466, 128
        %s468 = scalar_lea.vmem [#allocation7], %s467
        %p469 = pneg %p225
        %p470 = pneg %p222
        %p471 = pneg %p253
        %p472 = pneg %p250
        %s473 = smul.u32 16, %s26
        %p474 = scmp.lt.s32.totalorder %s25, 1
        %s475 = scalar_select %p474, %s25, 1
        %p476 = scmp.lt.s32.totalorder %s473, 31
        %s477 = scalar_select %p476, %s473, 31
        %s478 = smul.addr %s475, 32
        %s479 = sadd.s32 %s477, %s478
        %s480 = smul.addr %s479, 8
        %s481 = scalar_lea.vmem %s8, %s480
        %s482 = smul.u32 16, %s26
        %p483 = scmp.lt.s32.totalorder %s25, 1
        %s484 = scalar_select %p483, %s25, 1
        %p485 = scmp.lt.s32.totalorder %s482, 31
        %s486 = scalar_select %p485, %s482, 31
        %s487 = smul.addr %s484, 32
        %s488 = sadd.s32 %s486, %s487
        %s489 = smul.addr %s488, 8
        %s490 = scalar_lea.vmem %s1, %s489
        %s491 = smul.u32 16, %s26
        %s492 = smul.u32 16, %s27
        %p493 = scmp.lt.s32.totalorder %s25, 1
        %s494 = scalar_select %p493, %s25, 1
        %p495 = scmp.lt.s32.totalorder %s492, 31
        %s496 = scalar_select %p495, %s492, 31
        %s497 = smul.addr %s494, 32
        %s498 = sadd.s32 %s496, %s497
        %s499 = smul.addr %s498, 8
        %s500 = scalar_lea.vmem %s2, %s499
        %s501 = smul.u32 16, %s27
        %s502 = smul.u32 16, %s26
        %s503 = smul.u32 16, %s26
        %p504 = scmp.lt.s32.totalorder %s25, 1
        %s505 = scalar_select %p504, %s25, 1
        %p506 = scmp.lt.s32.totalorder %s503, 31
        %s507 = scalar_select %p506, %s503, 31
        %s508 = smul.addr %s505, 32
        %s509 = sadd.s32 %s507, %s508
        %s510 = smul.addr %s509, 8
        %s511 = scalar_lea.vmem %s8, %s510
        %s512 = smul.u32 16, %s26
        %p513 = scmp.eq.s32.totalorder %s27, 0
        // Predicated region
        $region91: #{tpu_custom_call.1} parent=85 // pred_check
          %p514 = pneg %p513
        $region92: #{tpu_custom_call.1} parent=85 // pred_check_branch
          %516 = sbr.rel (%p514) target = $region94
        $region93: #{tpu_custom_call.1} parent=85 // pred_region
          %v517 = vld [vmem:[%s490] sm:$0xff]
          %v518 = vld [vmem:[%s490 + $0x8] sm:$0xff]
          %v519 = vld [vmem:[%s490 + $0x10] sm:$0xff]
          %v520 = vld [vmem:[%s490 + $0x18] sm:$0xff]
          %v521 = vld [vmem:[%s490 + $0x20] sm:$0xff]
          %v522 = vld [vmem:[%s490 + $0x28] sm:$0xff]
          %v523 = vld [vmem:[%s490 + $0x30] sm:$0xff]
          %v524 = vld [vmem:[%s490 + $0x38] sm:$0xff]
          %v525 = vld [vmem:[%s490 + $0x40] sm:$0xff]
          %v526 = vld [vmem:[%s490 + $0x48] sm:$0xff]
          %v527 = vld [vmem:[%s490 + $0x50] sm:$0xff]
          %v528 = vld [vmem:[%s490 + $0x58] sm:$0xff]
          %v529 = vld [vmem:[%s490 + $0x60] sm:$0xff]
          %v530 = vld [vmem:[%s490 + $0x68] sm:$0xff]
          %v531 = vld [vmem:[%s490 + $0x70] sm:$0xff]
          %v532 = vld [vmem:[%s490 + $0x78] sm:$0xff]
          %v533 = vld [vmem:[%s3] sm:$0xff]
          %v534 = vld [vmem:[%s3 + $0x8] sm:$0xff]
          %v535 = vld [vmem:[%s3 + $0x10] sm:$0xff]
          %v536 = vld [vmem:[%s3 + $0x18] sm:$0xff]
          %v537 = vld [vmem:[%s3 + $0x20] sm:$0xff]
          %v538 = vld [vmem:[%s3 + $0x28] sm:$0xff]
          %v539 = vld [vmem:[%s3 + $0x30] sm:$0xff]
          %v540 = vld [vmem:[%s3 + $0x38] sm:$0xff]
          %v541 = vld [vmem:[%s4] sm:$0x1]
          %v543 = vlaneseq
          %v544 = vshrl.u32 %v543, 7
          %v545 = vsub.s32 0, %v544
          %v546 = vrot.slane %v541, %v545
          %vm548 = vcmask 523264
          %v550 = vsel %vm548, %v517, 0
          %v553 = vsel %vm548, %v518, 0
          %v556 = vsel %vm548, %v519, 0
          %v559 = vsel %vm548, %v520, 0
          %v562 = vsel %vm548, %v521, 0
          %v565 = vsel %vm548, %v522, 0
          %v568 = vsel %vm548, %v523, 0
          %v571 = vsel %vm548, %v524, 0
          %v574 = vsel %vm548, %v525, 0
          %v577 = vsel %vm548, %v526, 0
          %v580 = vsel %vm548, %v527, 0
          %v583 = vsel %vm548, %v528, 0
          %v586 = vsel %vm548, %v529, 0
          %v589 = vsel %vm548, %v530, 0
          %v592 = vsel %vm548, %v531, 0
          %v595 = vsel %vm548, %v532, 0
          %597 = vmatprep.subr.mxu0 0.0
          %598 = vmatpush1.msra.mxu0 %v533
          %599 = vmatprep.subr.mxu0 0.0
          %600 = vmatpush1.msra.mxu0 %v534
          %601 = vmatprep.subr.mxu0 0.0
          %602 = vmatpush1.msra.mxu0 %v535
          %603 = vmatprep.subr.mxu0 0.0
          %604 = vmatpush1.msra.mxu0 %v536
          %605 = vmatprep.subr.mxu0 0.0
          %606 = vmatpush1.msra.mxu0 %v537
          %607 = vmatprep.subr.mxu0 0.0
          %608 = vmatpush1.msra.mxu0 %v538
          %609 = vmatprep.subr.mxu0 0.0
          %610 = vmatpush1.msra.mxu0 %v539
          %611 = vmatprep.subr.mxu0 0.0
          %612 = vmatpush1.msra.mxu0 %v540
          %613 = vmatprep.subr.mxu0 0.0
          %614 = vmatpush1.msra.mxu0 0.0
          %615 = vmatprep.subr.mxu0 0.0
          %616 = vmatpush1.msra.mxu0 0.0
          %617 = vmatprep.subr.mxu0 0.0
          %618 = vmatpush1.msra.mxu0 0.0
          %619 = vmatprep.subr.mxu0 0.0
          %620 = vmatpush1.msra.mxu0 0.0
          %621 = vmatprep.subr.mxu0 0.0
          %622 = vmatpush1.msra.mxu0 0.0
          %623 = vmatprep.subr.mxu0 0.0
          %624 = vmatpush1.msra.mxu0 0.0
          %625 = vmatprep.subr.mxu0 0.0
          %626 = vmatpush1.msra.mxu0 0.0
          %627 = vmatprep.subr.mxu0 0.0
          %628 = vmatpush1.msra.mxu0 0.0
          %629 = vmatprep.subr.mxu0 0.0
          %630 = vmatpush1.msra.mxu0 0.0
          %631 = vmatprep.subr.mxu0 0.0
          %632 = vmatpush1.msra.mxu0 0.0
          %633 = vmatprep.subr.mxu0 0.0
          %634 = vmatpush1.msra.mxu0 0.0
          %635 = vmatprep.subr.mxu0 0.0
          %636 = vmatpush1.msra.mxu0 0.0
          %637 = vmatprep.subr.mxu0 0.0
          %638 = vmatpush1.msra.mxu0 0.0
          %639 = vmatprep.subr.mxu0 0.0
          %640 = vmatpush1.msra.mxu0 0.0
          %641 = vmatprep.subr.mxu0 0.0
          %642 = vmatpush1.msra.mxu0 0.0
          %643 = vmatprep.subr.mxu0 0.0
          %644 = vmatpush1.msra.mxu0 0.0
          %645 = vmatprep.subr.mxu0 0.0
          %646 = vmatpush1.msra.mxu0 0.0
          %647 = vmatprep.subr.mxu0 0.0
          %648 = vmatpush1.msra.mxu0 0.0
          %649 = vmatprep.subr.mxu0 0.0
          %650 = vmatpush1.msra.mxu0 0.0
          %651 = vmatprep.subr.mxu0 0.0
          %652 = vmatpush1.msra.mxu0 0.0
          %653 = vmatprep.subr.mxu0 0.0
          %654 = vmatpush1.msra.mxu0 0.0
          %655 = vmatprep.subr.mxu0 0.0
          %656 = vmatpush1.msra.mxu0 0.0
          %657 = vmatprep.subr.mxu0 0.0
          %658 = vmatpush1.msra.mxu0 0.0
          %659 = vmatprep.subr.mxu0 0.0
          %660 = vmatpush1.msra.mxu0 0.0
          %661 = vmatprep.mubr.f32.mxu0 0.0
          %662 = vmatmul.mubr.f32.gmra.mrb[0].mxu0 %v550
          %v663 = vpop.f32.mrb[0].mxu0
          %v664 = vadd.f32 %v546, %v663
          %v665 = vpop.f32.mrb[0].mxu0
          %666 = vmatprep.mubr.f32.mxu0 0.0
          %667 = vmatmul.mubr.f32.gmra.mrb[0].mxu0 %v553
          %v668 = vpop.f32.mrb[0].mxu0
          %v669 = vadd.f32 %v546, %v668
          %v670 = vpop.f32.mrb[0].mxu0
          %671 = vmatprep.mubr.f32.mxu0 0.0
          %672 = vmatmul.mubr.f32.gmra.mrb[0].mxu0 %v556
          %v673 = vpop.f32.mrb[0].mxu0
          %v674 = vadd.f32 %v546, %v673
          %v675 = vpop.f32.mrb[0].mxu0
          %676 = vmatprep.mubr.f32.mxu0 0.0
          %677 = vmatmul.mubr.f32.gmra.mrb[0].mxu0 %v559
          %v678 = vpop.f32.mrb[0].mxu0
          %v679 = vadd.f32 %v546, %v678
          %v680 = vpop.f32.mrb[0].mxu0
          %681 = vmatprep.mubr.f32.mxu0 0.0
          %682 = vmatmul.mubr.f32.gmra.mrb[0].mxu0 %v562
          %v683 = vpop.f32.mrb[0].mxu0
          %v684 = vadd.f32 %v546, %v683
          %v685 = vpop.f32.mrb[0].mxu0
          %686 = vmatprep.mubr.f32.mxu0 0.0
          %687 = vmatmul.mubr.f32.gmra.mrb[0].mxu0 %v565
          %v688 = vpop.f32.mrb[0].mxu0
          %v689 = vadd.f32 %v546, %v688
          %v690 = vpop.f32.mrb[0].mxu0
          %691 = vmatprep.mubr.f32.mxu0 0.0
          %692 = vmatmul.mubr.f32.gmra.mrb[0].mxu0 %v568
          %v693 = vpop.f32.mrb[0].mxu0
          %v694 = vadd.f32 %v546, %v693
          %v695 = vpop.f32.mrb[0].mxu0
          %696 = vmatprep.mubr.f32.mxu0 0.0
          %697 = vmatmul.mubr.f32.gmra.mrb[0].mxu0 %v571
          %v698 = vpop.f32.mrb[0].mxu0
          %v699 = vadd.f32 %v546, %v698
          %v700 = vpop.f32.mrb[0].mxu0
          %701 = vmatprep.mubr.f32.mxu0 0.0
          %702 = vmatmul.mubr.f32.gmra.mrb[0].mxu0 %v574
          %v703 = vpop.f32.mrb[0].mxu0
          %v704 = vadd.f32 %v546, %v703
          %v705 = vpop.f32.mrb[0].mxu0
          %706 = vmatprep.mubr.f32.mxu0 0.0
          %707 = vmatmul.mubr.f32.gmra.mrb[0].mxu0 %v577
          %v708 = vpop.f32.mrb[0].mxu0
          %v709 = vadd.f32 %v546, %v708
          %v710 = vpop.f32.mrb[0].mxu0
          %711 = vmatprep.mubr.f32.mxu0 0.0
          %712 = vmatmul.mubr.f32.gmra.mrb[0].mxu0 %v580
          %v713 = vpop.f32.mrb[0].mxu0
          %v714 = vadd.f32 %v546, %v713
          %v715 = vpop.f32.mrb[0].mxu0
          %716 = vmatprep.mubr.f32.mxu0 0.0
          %717 = vmatmul.mubr.f32.gmra.mrb[0].mxu0 %v583
          %v718 = vpop.f32.mrb[0].mxu0
          %v719 = vadd.f32 %v546, %v718
          %v720 = vpop.f32.mrb[0].mxu0
          %721 = vmatprep.mubr.f32.mxu0 0.0
          %722 = vmatmul.mubr.f32.gmra.mrb[0].mxu0 %v586
          %v723 = vpop.f32.mrb[0].mxu0
          %v724 = vadd.f32 %v546, %v723
          %v725 = vpop.f32.mrb[0].mxu0
          %726 = vmatprep.mubr.f32.mxu0 0.0
          %727 = vmatmul.mubr.f32.gmra.mrb[0].mxu0 %v589
          %v728 = vpop.f32.mrb[0].mxu0
          %v729 = vadd.f32 %v546, %v728
          %v730 = vpop.f32.mrb[0].mxu0
          %731 = vmatprep.mubr.f32.mxu0 0.0
          %732 = vmatmul.mubr.f32.gmra.mrb[0].mxu0 %v592
          %v733 = vpop.f32.mrb[0].mxu0
          %v734 = vadd.f32 %v546, %v733
          %v735 = vpop.f32.mrb[0].mxu0
          %736 = vmatprep.mubr.f32.mxu0 0.0
          %737 = vmatmul.mubr.f32.gmra.mrb[0].mxu0 %v595
          %v738 = vpop.f32.mrb[0].mxu0
          %v739 = vadd.f32 %v546, %v738
          %v740 = vpop.f32.mrb[0].mxu0
          %741 = vdwg.mxu0
          %vm742 = vcmask 64512
          %743 = vst.msk [vmem:[#allocation2] sm:$0xff] %vm742, %v664
          %744 = vst.msk [vmem:[#allocation2 + $0x8] sm:$0xff] %vm742, %v669
          %745 = vst.msk [vmem:[#allocation2 + $0x10] sm:$0xff] %vm742, %v674
          %746 = vst.msk [vmem:[#allocation2 + $0x18] sm:$0xff] %vm742, %v679
          %747 = vst.msk [vmem:[#allocation2 + $0x20] sm:$0xff] %vm742, %v684
          %748 = vst.msk [vmem:[#allocation2 + $0x28] sm:$0xff] %vm742, %v689
          %749 = vst.msk [vmem:[#allocation2 + $0x30] sm:$0xff] %vm742, %v694
          %750 = vst.msk [vmem:[#allocation2 + $0x38] sm:$0xff] %vm742, %v699
          %751 = vst.msk [vmem:[#allocation2 + $0x40] sm:$0xff] %vm742, %v704
          %752 = vst.msk [vmem:[#allocation2 + $0x48] sm:$0xff] %vm742, %v709
          %753 = vst.msk [vmem:[#allocation2 + $0x50] sm:$0xff] %vm742, %v714
          %754 = vst.msk [vmem:[#allocation2 + $0x58] sm:$0xff] %vm742, %v719
          %755 = vst.msk [vmem:[#allocation2 + $0x60] sm:$0xff] %vm742, %v724
          %756 = vst.msk [vmem:[#allocation2 + $0x68] sm:$0xff] %vm742, %v729
          %757 = vst.msk [vmem:[#allocation2 + $0x70] sm:$0xff] %vm742, %v734
          %758 = vst.msk [vmem:[#allocation2 + $0x78] sm:$0xff] %vm742, %v739
          %vm759 = vcmask 7168
          %760 = vst.msk [vmem:[#allocation3] sm:$0xff] %vm759, -inf
          %761 = vst.msk [vmem:[#allocation3 + $0x8] sm:$0xff] %vm759, -inf
          %762 = vst.msk [vmem:[#allocation3 + $0x10] sm:$0xff] %vm759, -inf
          %763 = vst.msk [vmem:[#allocation3 + $0x18] sm:$0xff] %vm759, -inf
          %764 = vst.msk [vmem:[#allocation3 + $0x20] sm:$0xff] %vm759, -inf
          %765 = vst.msk [vmem:[#allocation3 + $0x28] sm:$0xff] %vm759, -inf
          %766 = vst.msk [vmem:[#allocation3 + $0x30] sm:$0xff] %vm759, -inf
          %767 = vst.msk [vmem:[#allocation3 + $0x38] sm:$0xff] %vm759, -inf
          %768 = vst.msk [vmem:[#allocation3 + $0x40] sm:$0xff] %vm759, -inf
          %769 = vst.msk [vmem:[#allocation3 + $0x48] sm:$0xff] %vm759, -inf
          %770 = vst.msk [vmem:[#allocation3 + $0x50] sm:$0xff] %vm759, -inf
          %771 = vst.msk [vmem:[#allocation3 + $0x58] sm:$0xff] %vm759, -inf
          %772 = vst.msk [vmem:[#allocation3 + $0x60] sm:$0xff] %vm759, -inf
          %773 = vst.msk [vmem:[#allocation3 + $0x68] sm:$0xff] %vm759, -inf
          %774 = vst.msk [vmem:[#allocation3 + $0x70] sm:$0xff] %vm759, -inf
          %775 = vst.msk [vmem:[#allocation3 + $0x78] sm:$0xff] %vm759, -inf
          %776 = vst.msk [vmem:[#allocation4] sm:$0xff] %vm759, 0.0
          %777 = vst.msk [vmem:[#allocation4 + $0x8] sm:$0xff] %vm759, 0.0
          %778 = vst.msk [vmem:[#allocation4 + $0x10] sm:$0xff] %vm759, 0.0
          %779 = vst.msk [vmem:[#allocation4 + $0x18] sm:$0xff] %vm759, 0.0
          %780 = vst.msk [vmem:[#allocation4 + $0x20] sm:$0xff] %vm759, 0.0
          %781 = vst.msk [vmem:[#allocation4 + $0x28] sm:$0xff] %vm759, 0.0
          %782 = vst.msk [vmem:[#allocation4 + $0x30] sm:$0xff] %vm759, 0.0
          %783 = vst.msk [vmem:[#allocation4 + $0x38] sm:$0xff] %vm759, 0.0
          %784 = vst.msk [vmem:[#allocation4 + $0x40] sm:$0xff] %vm759, 0.0
          %785 = vst.msk [vmem:[#allocation4 + $0x48] sm:$0xff] %vm759, 0.0
          %786 = vst.msk [vmem:[#allocation4 + $0x50] sm:$0xff] %vm759, 0.0
          %787 = vst.msk [vmem:[#allocation4 + $0x58] sm:$0xff] %vm759, 0.0
          %788 = vst.msk [vmem:[#allocation4 + $0x60] sm:$0xff] %vm759, 0.0
          %789 = vst.msk [vmem:[#allocation4 + $0x68] sm:$0xff] %vm759, 0.0
          %790 = vst.msk [vmem:[#allocation4 + $0x70] sm:$0xff] %vm759, 0.0
          %791 = vst.msk [vmem:[#allocation4 + $0x78] sm:$0xff] %vm759, 0.0
          %792 = vst.msk [vmem:[#allocation5] sm:$0xff] %vm548, 0.0
          %793 = vst.msk [vmem:[#allocation5 + $0x8] sm:$0xff] %vm548, 0.0
          %794 = vst.msk [vmem:[#allocation5 + $0x10] sm:$0xff] %vm548, 0.0
          %795 = vst.msk [vmem:[#allocation5 + $0x18] sm:$0xff] %vm548, 0.0
          %796 = vst.msk [vmem:[#allocation5 + $0x20] sm:$0xff] %vm548, 0.0
          %797 = vst.msk [vmem:[#allocation5 + $0x28] sm:$0xff] %vm548, 0.0
          %798 = vst.msk [vmem:[#allocation5 + $0x30] sm:$0xff] %vm548, 0.0
          %799 = vst.msk [vmem:[#allocation5 + $0x38] sm:$0xff] %vm548, 0.0
          %800 = vst.msk [vmem:[#allocation5 + $0x40] sm:$0xff] %vm548, 0.0
          %801 = vst.msk [vmem:[#allocation5 + $0x48] sm:$0xff] %vm548, 0.0
          %802 = vst.msk [vmem:[#allocation5 + $0x50] sm:$0xff] %vm548, 0.0
          %803 = vst.msk [vmem:[#allocation5 + $0x58] sm:$0xff] %vm548, 0.0
          %804 = vst.msk [vmem:[#allocation5 + $0x60] sm:$0xff] %vm548, 0.0
          %805 = vst.msk [vmem:[#allocation5 + $0x68] sm:$0xff] %vm548, 0.0
          %806 = vst.msk [vmem:[#allocation5 + $0x70] sm:$0xff] %vm548, 0.0
          %807 = vst.msk [vmem:[#allocation5 + $0x78] sm:$0xff] %vm548, 0.0
        $region94: #{tpu_custom_call.1} parent=85 // pred_fallthru
          _
        %v808 = vld [vmem:[%s500] sm:$0xff]
        %v809 = vld [vmem:[%s500 + $0x8] sm:$0xff]
        %v810 = vld [vmem:[%s500 + $0x10] sm:$0xff]
        %v811 = vld [vmem:[%s500 + $0x18] sm:$0xff]
        %v812 = vld [vmem:[%s500 + $0x20] sm:$0xff]
        %v813 = vld [vmem:[%s500 + $0x28] sm:$0xff]
        %v814 = vld [vmem:[%s500 + $0x30] sm:$0xff]
        %v815 = vld [vmem:[%s500 + $0x38] sm:$0xff]
        %v816 = vld [vmem:[%s500 + $0x40] sm:$0xff]
        %v817 = vld [vmem:[%s500 + $0x48] sm:$0xff]
        %v818 = vld [vmem:[%s500 + $0x50] sm:$0xff]
        %v819 = vld [vmem:[%s500 + $0x58] sm:$0xff]
        %v820 = vld [vmem:[%s500 + $0x60] sm:$0xff]
        %v821 = vld [vmem:[%s500 + $0x68] sm:$0xff]
        %v822 = vld [vmem:[%s500 + $0x70] sm:$0xff]
        %v823 = vld [vmem:[%s500 + $0x78] sm:$0xff]
        %v824 = vld [vmem:[%s5] sm:$0xff]
        %v825 = vld [vmem:[%s5 + $0x8] sm:$0xff]
        %v826 = vld [vmem:[%s5 + $0x10] sm:$0xff]
        %v827 = vld [vmem:[%s5 + $0x18] sm:$0xff]
        %v828 = vld [vmem:[%s5 + $0x20] sm:$0xff]
        %v829 = vld [vmem:[%s5 + $0x28] sm:$0xff]
        %v830 = vld [vmem:[%s5 + $0x30] sm:$0xff]
        %v831 = vld [vmem:[%s5 + $0x38] sm:$0xff]
        %v832 = vld [vmem:[%s6] sm:$0x1]
        %v834 = vlaneseq
        %v835 = vshrl.u32 %v834, 7
        %v836 = vsub.s32 0, %v835
        %v837 = vrot.slane %v832, %v836
        %vm839 = vcmask 523264
        %v841 = vsel %vm839, %v808, 0
        %v844 = vsel %vm839, %v809, 0
        %v847 = vsel %vm839, %v810, 0
        %v850 = vsel %vm839, %v811, 0
        %v853 = vsel %vm839, %v812, 0
        %v856 = vsel %vm839, %v813, 0
        %v859 = vsel %vm839, %v814, 0
        %v862 = vsel %vm839, %v815, 0
        %v865 = vsel %vm839, %v816, 0
        %v868 = vsel %vm839, %v817, 0
        %v871 = vsel %vm839, %v818, 0
        %v874 = vsel %vm839, %v819, 0
        %v877 = vsel %vm839, %v820, 0
        %v880 = vsel %vm839, %v821, 0
        %v883 = vsel %vm839, %v822, 0
        %v886 = vsel %vm839, %v823, 0
        %888 = vmatprep.subr.mxu0 0.0
        %889 = vmatpush1.msra.mxu0 %v824
        %890 = vmatprep.subr.mxu0 0.0
        %891 = vmatpush1.msra.mxu0 %v825
        %892 = vmatprep.subr.mxu0 0.0
        %893 = vmatpush1.msra.mxu0 %v826
        %894 = vmatprep.subr.mxu0 0.0
        %895 = vmatpush1.msra.mxu0 %v827
        %896 = vmatprep.subr.mxu0 0.0
        %897 = vmatpush1.msra.mxu0 %v828
        %898 = vmatprep.subr.mxu0 0.0
        %899 = vmatpush1.msra.mxu0 %v829
        %900 = vmatprep.subr.mxu0 0.0
        %901 = vmatpush1.msra.mxu0 %v830
        %902 = vmatprep.subr.mxu0 0.0
        %903 = vmatpush1.msra.mxu0 %v831
        %904 = vmatprep.subr.mxu0 0.0
        %905 = vmatpush1.msra.mxu0 0.0
        %906 = vmatprep.subr.mxu0 0.0
        %907 = vmatpush1.msra.mxu0 0.0
        %908 = vmatprep.subr.mxu0 0.0
        %909 = vmatpush1.msra.mxu0 0.0
        %910 = vmatprep.subr.mxu0 0.0
        %911 = vmatpush1.msra.mxu0 0.0
        %912 = vmatprep.subr.mxu0 0.0
        %913 = vmatpush1.msra.mxu0 0.0
        %914 = vmatprep.subr.mxu0 0.0
        %915 = vmatpush1.msra.mxu0 0.0
        %916 = vmatprep.subr.mxu0 0.0
        %917 = vmatpush1.msra.mxu0 0.0
        %918 = vmatprep.subr.mxu0 0.0
        %919 = vmatpush1.msra.mxu0 0.0
        %920 = vmatprep.subr.mxu0 0.0
        %921 = vmatpush1.msra.mxu0 0.0
        %922 = vmatprep.subr.mxu0 0.0
        %923 = vmatpush1.msra.mxu0 0.0
        %924 = vmatprep.subr.mxu0 0.0
        %925 = vmatpush1.msra.mxu0 0.0
        %926 = vmatprep.subr.mxu0 0.0
        %927 = vmatpush1.msra.mxu0 0.0
        %928 = vmatprep.subr.mxu0 0.0
        %929 = vmatpush1.msra.mxu0 0.0
        %930 = vmatprep.subr.mxu0 0.0
        %931 = vmatpush1.msra.mxu0 0.0
        %932 = vmatprep.subr.mxu0 0.0
        %933 = vmatpush1.msra.mxu0 0.0
        %934 = vmatprep.subr.mxu0 0.0
        %935 = vmatpush1.msra.mxu0 0.0
        %936 = vmatprep.subr.mxu0 0.0
        %937 = vmatpush1.msra.mxu0 0.0
        %938 = vmatprep.subr.mxu0 0.0
        %939 = vmatpush1.msra.mxu0 0.0
        %940 = vmatprep.subr.mxu0 0.0
        %941 = vmatpush1.msra.mxu0 0.0
        %942 = vmatprep.subr.mxu0 0.0
        %943 = vmatpush1.msra.mxu0 0.0
        %944 = vmatprep.subr.mxu0 0.0
        %945 = vmatpush1.msra.mxu0 0.0
        %946 = vmatprep.subr.mxu0 0.0
        %947 = vmatpush1.msra.mxu0 0.0
        %948 = vmatprep.subr.mxu0 0.0
        %949 = vmatpush1.msra.mxu0 0.0
        %950 = vmatprep.subr.mxu0 0.0
        %951 = vmatpush1.msra.mxu0 0.0
        %952 = vmatprep.mubr.f32.mxu0 0.0
        %953 = vmatmul.mubr.f32.gmra.mrb[0].mxu0 %v841
        %v954 = vpop.f32.mrb[0].mxu0
        %v955 = vadd.f32 %v837, %v954
        %v956 = vpop.f32.mrb[0].mxu0
        %957 = vmatprep.mubr.f32.mxu0 0.0
        %958 = vmatmul.mubr.f32.gmra.mrb[0].mxu0 %v844
        %v959 = vpop.f32.mrb[0].mxu0
        %v960 = vadd.f32 %v837, %v959
        %v961 = vpop.f32.mrb[0].mxu0
        %962 = vmatprep.mubr.f32.mxu0 0.0
        %963 = vmatmul.mubr.f32.gmra.mrb[0].mxu0 %v847
        %v964 = vpop.f32.mrb[0].mxu0
        %v965 = vadd.f32 %v837, %v964
        %v966 = vpop.f32.mrb[0].mxu0
        %967 = vmatprep.mubr.f32.mxu0 0.0
        %968 = vmatmul.mubr.f32.gmra.mrb[0].mxu0 %v850
        %v969 = vpop.f32.mrb[0].mxu0
        %v970 = vadd.f32 %v837, %v969
        %v971 = vpop.f32.mrb[0].mxu0
        %972 = vmatprep.mubr.f32.mxu0 0.0
        %973 = vmatmul.mubr.f32.gmra.mrb[0].mxu0 %v853
        %v974 = vpop.f32.mrb[0].mxu0
        %v975 = vadd.f32 %v837, %v974
        %v976 = vpop.f32.mrb[0].mxu0
        %977 = vmatprep.mubr.f32.mxu0 0.0
        %978 = vmatmul.mubr.f32.gmra.mrb[0].mxu0 %v856
        %v979 = vpop.f32.mrb[0].mxu0
        %v980 = vadd.f32 %v837, %v979
        %v981 = vpop.f32.mrb[0].mxu0
        %982 = vmatprep.mubr.f32.mxu0 0.0
        %983 = vmatmul.mubr.f32.gmra.mrb[0].mxu0 %v859
        %v984 = vpop.f32.mrb[0].mxu0
        %v985 = vadd.f32 %v837, %v984
        %v986 = vpop.f32.mrb[0].mxu0
        %987 = vmatprep.mubr.f32.mxu0 0.0
        %988 = vmatmul.mubr.f32.gmra.mrb[0].mxu0 %v862
        %v989 = vpop.f32.mrb[0].mxu0
        %v990 = vadd.f32 %v837, %v989
        %v991 = vpop.f32.mrb[0].mxu0
        %992 = vmatprep.mubr.f32.mxu0 0.0
        %993 = vmatmul.mubr.f32.gmra.mrb[0].mxu0 %v865
        %v994 = vpop.f32.mrb[0].mxu0
        %v995 = vadd.f32 %v837, %v994
        %v996 = vpop.f32.mrb[0].mxu0
        %997 = vmatprep.mubr.f32.mxu0 0.0
        %998 = vmatmul.mubr.f32.gmra.mrb[0].mxu0 %v868
        %v999 = vpop.f32.mrb[0].mxu0
        %v1000 = vadd.f32 %v837, %v999
        %v1001 = vpop.f32.mrb[0].mxu0
        %1002 = vmatprep.mubr.f32.mxu0 0.0
        %1003 = vmatmul.mubr.f32.gmra.mrb[0].mxu0 %v871
        %v1004 = vpop.f32.mrb[0].mxu0
        %v1005 = vadd.f32 %v837, %v1004
        %v1006 = vpop.f32.mrb[0].mxu0
        %1007 = vmatprep.mubr.f32.mxu0 0.0
        %1008 = vmatmul.mubr.f32.gmra.mrb[0].mxu0 %v874
        %v1009 = vpop.f32.mrb[0].mxu0
        %v1010 = vadd.f32 %v837, %v1009
        %v1011 = vpop.f32.mrb[0].mxu0
        %1012 = vmatprep.mubr.f32.mxu0 0.0
        %1013 = vmatmul.mubr.f32.gmra.mrb[0].mxu0 %v877
        %v1014 = vpop.f32.mrb[0].mxu0
        %v1015 = vadd.f32 %v837, %v1014
        %v1016 = vpop.f32.mrb[0].mxu0
        %1017 = vmatprep.mubr.f32.mxu0 0.0
        %1018 = vmatmul.mubr.f32.gmra.mrb[0].mxu0 %v880
        %v1019 = vpop.f32.mrb[0].mxu0
        %v1020 = vadd.f32 %v837, %v1019
        %v1021 = vpop.f32.mrb[0].mxu0
        %1022 = vmatprep.mubr.f32.mxu0 0.0
        %1023 = vmatmul.mubr.f32.gmra.mrb[0].mxu0 %v883
        %v1024 = vpop.f32.mrb[0].mxu0
        %v1025 = vadd.f32 %v837, %v1024
        %v1026 = vpop.f32.mrb[0].mxu0
        %1027 = vmatprep.mubr.f32.mxu0 0.0
        %1028 = vmatmul.mubr.f32.gmra.mrb[0].mxu0 %v886
        %v1029 = vpop.f32.mrb[0].mxu0
        %v1030 = vadd.f32 %v837, %v1029
        %v1031 = vpop.f32.mrb[0].mxu0
        %1032 = vdwg.mxu0
        %v1033 = vld [vmem:[#allocation2] sm:$0xff]
        %v1034 = vld [vmem:[#allocation2 + $0x8] sm:$0xff]
        %v1035 = vld [vmem:[#allocation2 + $0x10] sm:$0xff]
        %v1036 = vld [vmem:[#allocation2 + $0x18] sm:$0xff]
        %v1037 = vld [vmem:[#allocation2 + $0x20] sm:$0xff]
        %v1038 = vld [vmem:[#allocation2 + $0x28] sm:$0xff]
        %v1039 = vld [vmem:[#allocation2 + $0x30] sm:$0xff]
        %v1040 = vld [vmem:[#allocation2 + $0x38] sm:$0xff]
        %v1041 = vld [vmem:[#allocation2 + $0x40] sm:$0xff]
        %v1042 = vld [vmem:[#allocation2 + $0x48] sm:$0xff]
        %v1043 = vld [vmem:[#allocation2 + $0x50] sm:$0xff]
        %v1044 = vld [vmem:[#allocation2 + $0x58] sm:$0xff]
        %v1045 = vld [vmem:[#allocation2 + $0x60] sm:$0xff]
        %v1046 = vld [vmem:[#allocation2 + $0x68] sm:$0xff]
        %v1047 = vld [vmem:[#allocation2 + $0x70] sm:$0xff]
        %v1048 = vld [vmem:[#allocation2 + $0x78] sm:$0xff]
        %1065 = vrot.lane.b32.xlu0 %v955, 64
        %v1066 = vpop.permute.xlu0 %1065
        %1067 = vrot.lane.b32.xlu0 %v960, 64
        %v1068 = vpop.permute.xlu0 %1067
        %1069 = vrot.lane.b32.xlu0 %v965, 64
        %v1070 = vpop.permute.xlu0 %1069
        %1071 = vrot.lane.b32.xlu0 %v970, 64
        %v1072 = vpop.permute.xlu0 %1071
        %1073 = vrot.lane.b32.xlu0 %v975, 64
        %v1074 = vpop.permute.xlu0 %1073
        %1075 = vrot.lane.b32.xlu0 %v980, 64
        %v1076 = vpop.permute.xlu0 %1075
        %1077 = vrot.lane.b32.xlu0 %v985, 64
        %v1078 = vpop.permute.xlu0 %1077
        %1079 = vrot.lane.b32.xlu0 %v990, 64
        %v1080 = vpop.permute.xlu0 %1079
        %1081 = vrot.lane.b32.xlu0 %v995, 64
        %v1082 = vpop.permute.xlu0 %1081
        %1083 = vrot.lane.b32.xlu0 %v1000, 64
        %v1084 = vpop.permute.xlu0 %1083
        %1085 = vrot.lane.b32.xlu0 %v1005, 64
        %v1086 = vpop.permute.xlu0 %1085
        %1087 = vrot.lane.b32.xlu0 %v1010, 64
        %v1088 = vpop.permute.xlu0 %1087
        %1089 = vrot.lane.b32.xlu0 %v1015, 64
        %v1090 = vpop.permute.xlu0 %1089
        %1091 = vrot.lane.b32.xlu0 %v1020, 64
        %v1092 = vpop.permute.xlu0 %1091
        %1093 = vrot.lane.b32.xlu0 %v1025, 64
        %v1094 = vpop.permute.xlu0 %1093
        %1095 = vrot.lane.b32.xlu0 %v1030, 64
        %v1096 = vpop.permute.xlu0 %1095
        %vm1097 = vcmask 64512
        %v1099 = vsel %vm1097, %v1033, 0
        %v1102 = vsel %vm1097, %v1034, 0
        %v1105 = vsel %vm1097, %v1035, 0
        %v1108 = vsel %vm1097, %v1036, 0
        %v1111 = vsel %vm1097, %v1037, 0
        %v1114 = vsel %vm1097, %v1038, 0
        %v1117 = vsel %vm1097, %v1039, 0
        %v1120 = vsel %vm1097, %v1040, 0
        %v1123 = vsel %vm1097, %v1041, 0
        %v1126 = vsel %vm1097, %v1042, 0
        %v1129 = vsel %vm1097, %v1043, 0
        %v1132 = vsel %vm1097, %v1044, 0
        %v1135 = vsel %vm1097, %v1045, 0
        %v1138 = vsel %vm1097, %v1046, 0
        %v1141 = vsel %vm1097, %v1047, 0
        %v1144 = vsel %vm1097, %v1048, 0
        %v1146 = vsel %vm1097, %v1066, 0
        %v1148 = vsel %vm1097, %v1068, 0
        %v1150 = vsel %vm1097, %v1070, 0
        %v1152 = vsel %vm1097, %v1072, 0
        %v1154 = vsel %vm1097, %v1074, 0
        %v1156 = vsel %vm1097, %v1076, 0
        %v1158 = vsel %vm1097, %v1078, 0
        %v1160 = vsel %vm1097, %v1080, 0
        %v1162 = vsel %vm1097, %v1082, 0
        %v1164 = vsel %vm1097, %v1084, 0
        %v1166 = vsel %vm1097, %v1086, 0
        %v1168 = vsel %vm1097, %v1088, 0
        %v1170 = vsel %vm1097, %v1090, 0
        %v1172 = vsel %vm1097, %v1092, 0
        %v1174 = vsel %vm1097, %v1094, 0
        %v1176 = vsel %vm1097, %v1096, 0
        %1178 = vmatprep.subr.mxu0 0.0
        %1179 = vmatpush1.xpose.msra.mxu0 %v1146
        %1180 = vmatprep.subr.mxu0 0.0
        %1181 = vmatpush1.xpose.msra.mxu0 %v1148
        %1182 = vmatprep.subr.mxu0 0.0
        %1183 = vmatpush1.xpose.msra.mxu0 %v1150
        %1184 = vmatprep.subr.mxu0 0.0
        %1185 = vmatpush1.xpose.msra.mxu0 %v1152
        %1186 = vmatprep.subr.mxu0 0.0
        %1187 = vmatpush1.xpose.msra.mxu0 %v1154
        %1188 = vmatprep.subr.mxu0 0.0
        %1189 = vmatpush1.xpose.msra.mxu0 %v1156
        %1190 = vmatprep.subr.mxu0 0.0
        %1191 = vmatpush1.xpose.msra.mxu0 %v1158
        %1192 = vmatprep.subr.mxu0 0.0
        %1193 = vmatpush1.xpose.msra.mxu0 %v1160
        %1194 = vmatprep.subr.mxu0 0.0
        %1195 = vmatpush1.xpose.msra.mxu0 %v1162
        %1196 = vmatprep.subr.mxu0 0.0
        %1197 = vmatpush1.xpose.msra.mxu0 %v1164
        %1198 = vmatprep.subr.mxu0 0.0
        %1199 = vmatpush1.xpose.msra.mxu0 %v1166
        %1200 = vmatprep.subr.mxu0 0.0
        %1201 = vmatpush1.xpose.msra.mxu0 %v1168
        %1202 = vmatprep.subr.mxu0 0.0
        %1203 = vmatpush1.xpose.msra.mxu0 %v1170
        %1204 = vmatprep.subr.mxu0 0.0
        %1205 = vmatpush1.xpose.msra.mxu0 %v1172
        %1206 = vmatprep.subr.mxu0 0.0
        %1207 = vmatpush1.xpose.msra.mxu0 %v1174
        %1208 = vmatprep.subr.mxu0 0.0
        %1209 = vmatpush1.xpose.msra.mxu0 %v1176
        %1210 = vmatprep.subr.mxu0 0.0
        %1211 = vmatpush1.xpose.msra.mxu0 0.0
        %1212 = vmatprep.subr.mxu0 0.0
        %1213 = vmatpush1.xpose.msra.mxu0 0.0
        %1214 = vmatprep.subr.mxu0 0.0
        %1215 = vmatpush1.xpose.msra.mxu0 0.0
        %1216 = vmatprep.subr.mxu0 0.0
        %1217 = vmatpush1.xpose.msra.mxu0 0.0
        %1218 = vmatprep.subr.mxu0 0.0
        %1219 = vmatpush1.xpose.msra.mxu0 0.0
        %1220 = vmatprep.subr.mxu0 0.0
        %1221 = vmatpush1.xpose.msra.mxu0 0.0
        %1222 = vmatprep.subr.mxu0 0.0
        %1223 = vmatpush1.xpose.msra.mxu0 0.0
        %1224 = vmatprep.subr.mxu0 0.0
        %1225 = vmatpush1.xpose.msra.mxu0 0.0
        %1226 = vmatprep.subr.mxu0 0.0
        %1227 = vmatpush1.xpose.msra.mxu0 0.0
        %1228 = vmatprep.subr.mxu0 0.0
        %1229 = vmatpush1.xpose.msra.mxu0 0.0
        %1230 = vmatprep.subr.mxu0 0.0
        %1231 = vmatpush1.xpose.msra.mxu0 0.0
        %1232 = vmatprep.subr.mxu0 0.0
        %1233 = vmatpush1.xpose.msra.mxu0 0.0
        %1234 = vmatprep.subr.mxu0 0.0
        %1235 = vmatpush1.xpose.msra.mxu0 0.0
        %1236 = vmatprep.subr.mxu0 0.0
        %1237 = vmatpush1.xpose.msra.mxu0 0.0
        %1238 = vmatprep.subr.mxu0 0.0
        %1239 = vmatpush1.xpose.msra.mxu0 0.0
        %1240 = vmatprep.subr.mxu0 0.0
        %1241 = vmatpush1.xpose.msra.mxu0 0.0
        %1242 = vmatprep.mubr.f32.mxu0 0.0
        %1243 = vmatmul.mubr.f32.gmra.mrb[0].mxu0 %v1099
        %v1244 = vpop.f32.mrb[0].mxu0
        %v1245 = vadd.f32 0.0, %v1244
        %v1246 = vpop.f32.mrb[0].mxu0
        %1247 = vmatprep.mubr.f32.mxu0 0.0
        %1248 = vmatmul.mubr.f32.gmra.mrb[0].mxu0 %v1102
        %v1249 = vpop.f32.mrb[0].mxu0
        %v1250 = vadd.f32 0.0, %v1249
        %v1251 = vpop.f32.mrb[0].mxu0
        %1252 = vmatprep.mubr.f32.mxu0 0.0
        %1253 = vmatmul.mubr.f32.gmra.mrb[0].mxu0 %v1105
        %v1254 = vpop.f32.mrb[0].mxu0
        %v1255 = vadd.f32 0.0, %v1254
        %v1256 = vpop.f32.mrb[0].mxu0
        %1257 = vmatprep.mubr.f32.mxu0 0.0
        %1258 = vmatmul.mubr.f32.gmra.mrb[0].mxu0 %v1108
        %v1259 = vpop.f32.mrb[0].mxu0
        %v1260 = vadd.f32 0.0, %v1259
        %v1261 = vpop.f32.mrb[0].mxu0
        %1262 = vmatprep.mubr.f32.mxu0 0.0
        %1263 = vmatmul.mubr.f32.gmra.mrb[0].mxu0 %v1111
        %v1264 = vpop.f32.mrb[0].mxu0
        %v1265 = vadd.f32 0.0, %v1264
        %v1266 = vpop.f32.mrb[0].mxu0
        %1267 = vmatprep.mubr.f32.mxu0 0.0
        %1268 = vmatmul.mubr.f32.gmra.mrb[0].mxu0 %v1114
        %v1269 = vpop.f32.mrb[0].mxu0
        %v1270 = vadd.f32 0.0, %v1269
        %v1271 = vpop.f32.mrb[0].mxu0
        %1272 = vmatprep.mubr.f32.mxu0 0.0
        %1273 = vmatmul.mubr.f32.gmra.mrb[0].mxu0 %v1117
        %v1274 = vpop.f32.mrb[0].mxu0
        %v1275 = vadd.f32 0.0, %v1274
        %v1276 = vpop.f32.mrb[0].mxu0
        %1277 = vmatprep.mubr.f32.mxu0 0.0
        %1278 = vmatmul.mubr.f32.gmra.mrb[0].mxu0 %v1120
        %v1279 = vpop.f32.mrb[0].mxu0
        %v1280 = vadd.f32 0.0, %v1279
        %v1281 = vpop.f32.mrb[0].mxu0
        %1282 = vmatprep.mubr.f32.mxu0 0.0
        %1283 = vmatmul.mubr.f32.gmra.mrb[0].mxu0 %v1123
        %v1284 = vpop.f32.mrb[0].mxu0
        %v1285 = vadd.f32 0.0, %v1284
        %v1286 = vpop.f32.mrb[0].mxu0
        %1287 = vmatprep.mubr.f32.mxu0 0.0
        %1288 = vmatmul.mubr.f32.gmra.mrb[0].mxu0 %v1126
        %v1289 = vpop.f32.mrb[0].mxu0
        %v1290 = vadd.f32 0.0, %v1289
        %v1291 = vpop.f32.mrb[0].mxu0
        %1292 = vmatprep.mubr.f32.mxu0 0.0
        %1293 = vmatmul.mubr.f32.gmra.mrb[0].mxu0 %v1129
        %v1294 = vpop.f32.mrb[0].mxu0
        %v1295 = vadd.f32 0.0, %v1294
        %v1296 = vpop.f32.mrb[0].mxu0
        %1297 = vmatprep.mubr.f32.mxu0 0.0
        %1298 = vmatmul.mubr.f32.gmra.mrb[0].mxu0 %v1132
        %v1299 = vpop.f32.mrb[0].mxu0
        %v1300 = vadd.f32 0.0, %v1299
        %v1301 = vpop.f32.mrb[0].mxu0
        %1302 = vmatprep.mubr.f32.mxu0 0.0
        %1303 = vmatmul.mubr.f32.gmra.mrb[0].mxu0 %v1135
        %v1304 = vpop.f32.mrb[0].mxu0
        %v1305 = vadd.f32 0.0, %v1304
        %v1306 = vpop.f32.mrb[0].mxu0
        %1307 = vmatprep.mubr.f32.mxu0 0.0
        %1308 = vmatmul.mubr.f32.gmra.mrb[0].mxu0 %v1138
        %v1309 = vpop.f32.mrb[0].mxu0
        %v1310 = vadd.f32 0.0, %v1309
        %v1311 = vpop.f32.mrb[0].mxu0
        %1312 = vmatprep.mubr.f32.mxu0 0.0
        %1313 = vmatmul.mubr.f32.gmra.mrb[0].mxu0 %v1141
        %v1314 = vpop.f32.mrb[0].mxu0
        %v1315 = vadd.f32 0.0, %v1314
        %v1316 = vpop.f32.mrb[0].mxu0
        %1317 = vmatprep.mubr.f32.mxu0 0.0
        %1318 = vmatmul.mubr.f32.gmra.mrb[0].mxu0 %v1144
        %v1319 = vpop.f32.mrb[0].mxu0
        %v1320 = vadd.f32 0.0, %v1319
        %v1321 = vpop.f32.mrb[0].mxu0
        %1322 = vdwg.mxu0
        %v1323 = vld [vmem:[#allocation3] sm:$0xff]
        %v1324 = vld [vmem:[#allocation3 + $0x8] sm:$0xff]
        %v1325 = vld [vmem:[#allocation3 + $0x10] sm:$0xff]
        %v1326 = vld [vmem:[#allocation3 + $0x18] sm:$0xff]
        %v1327 = vld [vmem:[#allocation3 + $0x20] sm:$0xff]
        %v1328 = vld [vmem:[#allocation3 + $0x28] sm:$0xff]
        %v1329 = vld [vmem:[#allocation3 + $0x30] sm:$0xff]
        %v1330 = vld [vmem:[#allocation3 + $0x38] sm:$0xff]
        %v1331 = vld [vmem:[#allocation3 + $0x40] sm:$0xff]
        %v1332 = vld [vmem:[#allocation3 + $0x48] sm:$0xff]
        %v1333 = vld [vmem:[#allocation3 + $0x50] sm:$0xff]
        %v1334 = vld [vmem:[#allocation3 + $0x58] sm:$0xff]
        %v1335 = vld [vmem:[#allocation3 + $0x60] sm:$0xff]
        %v1336 = vld [vmem:[#allocation3 + $0x68] sm:$0xff]
        %v1337 = vld [vmem:[#allocation3 + $0x70] sm:$0xff]
        %v1338 = vld [vmem:[#allocation3 + $0x78] sm:$0xff]
        %1339 = vmax.xlane.f32.xlu0 %v1245
        %v1340 = vpop.xlane.xlu0 %1339
        %1341 = vmax.xlane.f32.xlu0 %v1250
        %v1342 = vpop.xlane.xlu0 %1341
        %1343 = vmax.xlane.f32.xlu0 %v1255
        %v1344 = vpop.xlane.xlu0 %1343
        %1345 = vmax.xlane.f32.xlu0 %v1260
        %v1346 = vpop.xlane.xlu0 %1345
        %1347 = vmax.xlane.f32.xlu0 %v1265
        %v1348 = vpop.xlane.xlu0 %1347
        %1349 = vmax.xlane.f32.xlu0 %v1270
        %v1350 = vpop.xlane.xlu0 %1349
        %1351 = vmax.xlane.f32.xlu0 %v1275
        %v1352 = vpop.xlane.xlu0 %1351
        %1353 = vmax.xlane.f32.xlu0 %v1280
        %v1354 = vpop.xlane.xlu0 %1353
        %1355 = vmax.xlane.f32.xlu0 %v1285
        %v1356 = vpop.xlane.xlu0 %1355
        %1357 = vmax.xlane.f32.xlu0 %v1290
        %v1358 = vpop.xlane.xlu0 %1357
        %1359 = vmax.xlane.f32.xlu0 %v1295
        %v1360 = vpop.xlane.xlu0 %1359
        %1361 = vmax.xlane.f32.xlu0 %v1300
        %v1362 = vpop.xlane.xlu0 %1361
        %1363 = vmax.xlane.f32.xlu0 %v1305
        %v1364 = vpop.xlane.xlu0 %1363
        %1365 = vmax.xlane.f32.xlu0 %v1310
        %v1366 = vpop.xlane.xlu0 %1365
        %1367 = vmax.xlane.f32.xlu0 %v1315
        %v1368 = vpop.xlane.xlu0 %1367
        %1369 = vmax.xlane.f32.xlu0 %v1320
        %v1370 = vpop.xlane.xlu0 %1369
        %v1371 = vmax.f32 %v1323, %v1340
        %v1372 = vmax.f32 %v1324, %v1342
        %v1373 = vmax.f32 %v1325, %v1344
        %v1374 = vmax.f32 %v1326, %v1346
        %v1375 = vmax.f32 %v1327, %v1348
        %v1376 = vmax.f32 %v1328, %v1350
        %v1377 = vmax.f32 %v1329, %v1352
        %v1378 = vmax.f32 %v1330, %v1354
        %v1379 = vmax.f32 %v1331, %v1356
        %v1380 = vmax.f32 %v1332, %v1358
        %v1381 = vmax.f32 %v1333, %v1360
        %v1382 = vmax.f32 %v1334, %v1362
        %v1383 = vmax.f32 %v1335, %v1364
        %v1384 = vmax.f32 %v1336, %v1366
        %v1385 = vmax.f32 %v1337, %v1368
        %v1386 = vmax.f32 %v1338, %v1370
        %v1387 = vsub.f32 %v1323, %v1371
        %v1388 = vsub.f32 %v1324, %v1372
        %v1389 = vsub.f32 %v1325, %v1373
        %v1390 = vsub.f32 %v1326, %v1374
        %v1391 = vsub.f32 %v1327, %v1375
        %v1392 = vsub.f32 %v1328, %v1376
        %v1393 = vsub.f32 %v1329, %v1377
        %v1394 = vsub.f32 %v1330, %v1378
        %v1395 = vsub.f32 %v1331, %v1379
        %v1396 = vsub.f32 %v1332, %v1380
        %v1397 = vsub.f32 %v1333, %v1381
        %v1398 = vsub.f32 %v1334, %v1382
        %v1399 = vsub.f32 %v1335, %v1383
        %v1400 = vsub.f32 %v1336, %v1384
        %v1401 = vsub.f32 %v1337, %v1385
        %v1402 = vsub.f32 %v1338, %v1386
        %v1403 = vmul.f32 %v1387, 1.442695
        %v1404 = vpow.pop %v1403
        %v1405 = vmul.f32 %v1388, 1.442695
        %v1406 = vpow.pop %v1405
        %v1407 = vmul.f32 %v1389, 1.442695
        %v1408 = vpow.pop %v1407
        %v1409 = vmul.f32 %v1390, 1.442695
        %v1410 = vpow.pop %v1409
        %v1411 = vmul.f32 %v1391, 1.442695
        %v1412 = vpow.pop %v1411
        %v1413 = vmul.f32 %v1392, 1.442695
        %v1414 = vpow.pop %v1413
        %v1415 = vmul.f32 %v1393, 1.442695
        %v1416 = vpow.pop %v1415
        %v1417 = vmul.f32 %v1394, 1.442695
        %v1418 = vpow.pop %v1417
        %v1419 = vmul.f32 %v1395, 1.442695
        %v1420 = vpow.pop %v1419
        %v1421 = vmul.f32 %v1396, 1.442695
        %v1422 = vpow.pop %v1421
        %v1423 = vmul.f32 %v1397, 1.442695
        %v1424 = vpow.pop %v1423
        %v1425 = vmul.f32 %v1398, 1.442695
        %v1426 = vpow.pop %v1425
        %v1427 = vmul.f32 %v1399, 1.442695
        %v1428 = vpow.pop %v1427
        %v1429 = vmul.f32 %v1400, 1.442695
        %v1430 = vpow.pop %v1429
        %v1431 = vmul.f32 %v1401, 1.442695
        %v1432 = vpow.pop %v1431
        %v1433 = vmul.f32 %v1402, 1.442695
        %v1434 = vpow.pop %v1433
        %1436 = vset.pattern.permute.xlu0 0
        %1437 = vperm.xlu0 %1436, %v1371
        %v1438 = vpop.permute.xlu0 %1437
        %1441 = vset.pattern.permute.xlu0 0
        %1442 = vperm.xlu0 %1441, %v1372
        %v1443 = vpop.permute.xlu0 %1442
        %1446 = vset.pattern.permute.xlu0 0
        %1447 = vperm.xlu0 %1446, %v1373
        %v1448 = vpop.permute.xlu0 %1447
        %1451 = vset.pattern.permute.xlu0 0
        %1452 = vperm.xlu0 %1451, %v1374
        %v1453 = vpop.permute.xlu0 %1452
        %1456 = vset.pattern.permute.xlu0 0
        %1457 = vperm.xlu0 %1456, %v1375
        %v1458 = vpop.permute.xlu0 %1457
        %1461 = vset.pattern.permute.xlu0 0
        %1462 = vperm.xlu0 %1461, %v1376
        %v1463 = vpop.permute.xlu0 %1462
        %1466 = vset.pattern.permute.xlu0 0
        %1467 = vperm.xlu0 %1466, %v1377
        %v1468 = vpop.permute.xlu0 %1467
        %1471 = vset.pattern.permute.xlu0 0
        %1472 = vperm.xlu0 %1471, %v1378
        %v1473 = vpop.permute.xlu0 %1472
        %1476 = vset.pattern.permute.xlu0 0
        %1477 = vperm.xlu0 %1476, %v1379
        %v1478 = vpop.permute.xlu0 %1477
        %1481 = vset.pattern.permute.xlu0 0
        %1482 = vperm.xlu0 %1481, %v1380
        %v1483 = vpop.permute.xlu0 %1482
        %1486 = vset.pattern.permute.xlu0 0
        %1487 = vperm.xlu0 %1486, %v1381
        %v1488 = vpop.permute.xlu0 %1487
        %1491 = vset.pattern.permute.xlu0 0
        %1492 = vperm.xlu0 %1491, %v1382
        %v1493 = vpop.permute.xlu0 %1492
        %1496 = vset.pattern.permute.xlu0 0
        %1497 = vperm.xlu0 %1496, %v1383
        %v1498 = vpop.permute.xlu0 %1497
        %1501 = vset.pattern.permute.xlu0 0
        %1502 = vperm.xlu0 %1501, %v1384
        %v1503 = vpop.permute.xlu0 %1502
        %1506 = vset.pattern.permute.xlu0 0
        %1507 = vperm.xlu0 %1506, %v1385
        %v1508 = vpop.permute.xlu0 %1507
        %1511 = vset.pattern.permute.xlu0 0
        %1512 = vperm.xlu0 %1511, %v1386
        %v1513 = vpop.permute.xlu0 %1512
        %v1515 = vsub.f32 %v1245, %v1438
        %v1516 = vsub.f32 %v1250, %v1443
        %v1517 = vsub.f32 %v1255, %v1448
        %v1518 = vsub.f32 %v1260, %v1453
        %v1519 = vsub.f32 %v1265, %v1458
        %v1520 = vsub.f32 %v1270, %v1463
        %v1521 = vsub.f32 %v1275, %v1468
        %v1522 = vsub.f32 %v1280, %v1473
        %v1523 = vsub.f32 %v1285, %v1478
        %v1524 = vsub.f32 %v1290, %v1483
        %v1525 = vsub.f32 %v1295, %v1488
        %v1526 = vsub.f32 %v1300, %v1493
        %v1527 = vsub.f32 %v1305, %v1498
        %v1528 = vsub.f32 %v1310, %v1503
        %v1529 = vsub.f32 %v1315, %v1508
        %v1530 = vsub.f32 %v1320, %v1513
        %v1531 = vmul.f32 %v1515, 1.442695
        %v1532 = vpow.pop %v1531
        %v1533 = vmul.f32 %v1516, 1.442695
        %v1534 = vpow.pop %v1533
        %v1535 = vmul.f32 %v1517, 1.442695
        %v1536 = vpow.pop %v1535
        %v1537 = vmul.f32 %v1518, 1.442695
        %v1538 = vpow.pop %v1537
        %v1539 = vmul.f32 %v1519, 1.442695
        %v1540 = vpow.pop %v1539
        %v1541 = vmul.f32 %v1520, 1.442695
        %v1542 = vpow.pop %v1541
        %v1543 = vmul.f32 %v1521, 1.442695
        %v1544 = vpow.pop %v1543
        %v1545 = vmul.f32 %v1522, 1.442695
        %v1546 = vpow.pop %v1545
        %v1547 = vmul.f32 %v1523, 1.442695
        %v1548 = vpow.pop %v1547
        %v1549 = vmul.f32 %v1524, 1.442695
        %v1550 = vpow.pop %v1549
        %v1551 = vmul.f32 %v1525, 1.442695
        %v1552 = vpow.pop %v1551
        %v1553 = vmul.f32 %v1526, 1.442695
        %v1554 = vpow.pop %v1553
        %v1555 = vmul.f32 %v1527, 1.442695
        %v1556 = vpow.pop %v1555
        %v1557 = vmul.f32 %v1528, 1.442695
        %v1558 = vpow.pop %v1557
        %v1559 = vmul.f32 %v1529, 1.442695
        %v1560 = vpow.pop %v1559
        %v1561 = vmul.f32 %v1530, 1.442695
        %v1562 = vpow.pop %v1561
        %v1563 = vld [vmem:[#allocation4] sm:$0xff]
        %v1564 = vld [vmem:[#allocation4 + $0x8] sm:$0xff]
        %v1565 = vld [vmem:[#allocation4 + $0x10] sm:$0xff]
        %v1566 = vld [vmem:[#allocation4 + $0x18] sm:$0xff]
        %v1567 = vld [vmem:[#allocation4 + $0x20] sm:$0xff]
        %v1568 = vld [vmem:[#allocation4 + $0x28] sm:$0xff]
        %v1569 = vld [vmem:[#allocation4 + $0x30] sm:$0xff]
        %v1570 = vld [vmem:[#allocation4 + $0x38] sm:$0xff]
        %v1571 = vld [vmem:[#allocation4 + $0x40] sm:$0xff]
        %v1572 = vld [vmem:[#allocation4 + $0x48] sm:$0xff]
        %v1573 = vld [vmem:[#allocation4 + $0x50] sm:$0xff]
        %v1574 = vld [vmem:[#allocation4 + $0x58] sm:$0xff]
        %v1575 = vld [vmem:[#allocation4 + $0x60] sm:$0xff]
        %v1576 = vld [vmem:[#allocation4 + $0x68] sm:$0xff]
        %v1577 = vld [vmem:[#allocation4 + $0x70] sm:$0xff]
        %v1578 = vld [vmem:[#allocation4 + $0x78] sm:$0xff]
        %v1579 = vmul.f32 %v1404, %v1563
        %v1580 = vmul.f32 %v1406, %v1564
        %v1581 = vmul.f32 %v1408, %v1565
        %v1582 = vmul.f32 %v1410, %v1566
        %v1583 = vmul.f32 %v1412, %v1567
        %v1584 = vmul.f32 %v1414, %v1568
        %v1585 = vmul.f32 %v1416, %v1569
        %v1586 = vmul.f32 %v1418, %v1570
        %v1587 = vmul.f32 %v1420, %v1571
        %v1588 = vmul.f32 %v1422, %v1572
        %v1589 = vmul.f32 %v1424, %v1573
        %v1590 = vmul.f32 %v1426, %v1574
        %v1591 = vmul.f32 %v1428, %v1575
        %v1592 = vmul.f32 %v1430, %v1576
        %v1593 = vmul.f32 %v1432, %v1577
        %v1594 = vmul.f32 %v1434, %v1578
        %1595 = vadd.xlane.f32.xlu0 %v1532
        %v1596 = vpop.xlane.xlu0 %1595
        %1597 = vadd.xlane.f32.xlu0 %v1534
        %v1598 = vpop.xlane.xlu0 %1597
        %1599 = vadd.xlane.f32.xlu0 %v1536
        %v1600 = vpop.xlane.xlu0 %1599
        %1601 = vadd.xlane.f32.xlu0 %v1538
        %v1602 = vpop.xlane.xlu0 %1601
        %1603 = vadd.xlane.f32.xlu0 %v1540
        %v1604 = vpop.xlane.xlu0 %1603
        %1605 = vadd.xlane.f32.xlu0 %v1542
        %v1606 = vpop.xlane.xlu0 %1605
        %1607 = vadd.xlane.f32.xlu0 %v1544
        %v1608 = vpop.xlane.xlu0 %1607
        %1609 = vadd.xlane.f32.xlu0 %v1546
        %v1610 = vpop.xlane.xlu0 %1609
        %1611 = vadd.xlane.f32.xlu0 %v1548
        %v1612 = vpop.xlane.xlu0 %1611
        %1613 = vadd.xlane.f32.xlu0 %v1550
        %v1614 = vpop.xlane.xlu0 %1613
        %1615 = vadd.xlane.f32.xlu0 %v1552
        %v1616 = vpop.xlane.xlu0 %1615
        %1617 = vadd.xlane.f32.xlu0 %v1554
        %v1618 = vpop.xlane.xlu0 %1617
        %1619 = vadd.xlane.f32.xlu0 %v1556
        %v1620 = vpop.xlane.xlu0 %1619
        %1621 = vadd.xlane.f32.xlu0 %v1558
        %v1622 = vpop.xlane.xlu0 %1621
        %1623 = vadd.xlane.f32.xlu0 %v1560
        %v1624 = vpop.xlane.xlu0 %1623
        %1625 = vadd.xlane.f32.xlu0 %v1562
        %v1626 = vpop.xlane.xlu0 %1625
        %v1627 = vadd.f32 %v1579, %v1596
        %v1628 = vadd.f32 %v1580, %v1598
        %v1629 = vadd.f32 %v1581, %v1600
        %v1630 = vadd.f32 %v1582, %v1602
        %v1631 = vadd.f32 %v1583, %v1604
        %v1632 = vadd.f32 %v1584, %v1606
        %v1633 = vadd.f32 %v1585, %v1608
        %v1634 = vadd.f32 %v1586, %v1610
        %v1635 = vadd.f32 %v1587, %v1612
        %v1636 = vadd.f32 %v1588, %v1614
        %v1637 = vadd.f32 %v1589, %v1616
        %v1638 = vadd.f32 %v1590, %v1618
        %v1639 = vadd.f32 %v1591, %v1620
        %v1640 = vadd.f32 %v1592, %v1622
        %v1641 = vadd.f32 %v1593, %v1624
        %v1642 = vadd.f32 %v1594, %v1626
        %vm1643 = vcmask 7168
        %1644 = vst.msk [vmem:[#allocation4] sm:$0xff] %vm1643, %v1627
        %1645 = vst.msk [vmem:[#allocation4 + $0x8] sm:$0xff] %vm1643, %v1628
        %1646 = vst.msk [vmem:[#allocation4 + $0x10] sm:$0xff] %vm1643, %v1629
        %1647 = vst.msk [vmem:[#allocation4 + $0x18] sm:$0xff] %vm1643, %v1630
        %1648 = vst.msk [vmem:[#allocation4 + $0x20] sm:$0xff] %vm1643, %v1631
        %1649 = vst.msk [vmem:[#allocation4 + $0x28] sm:$0xff] %vm1643, %v1632
        %1650 = vst.msk [vmem:[#allocation4 + $0x30] sm:$0xff] %vm1643, %v1633
        %1651 = vst.msk [vmem:[#allocation4 + $0x38] sm:$0xff] %vm1643, %v1634
        %1652 = vst.msk [vmem:[#allocation4 + $0x40] sm:$0xff] %vm1643, %v1635
        %1653 = vst.msk [vmem:[#allocation4 + $0x48] sm:$0xff] %vm1643, %v1636
        %1654 = vst.msk [vmem:[#allocation4 + $0x50] sm:$0xff] %vm1643, %v1637
        %1655 = vst.msk [vmem:[#allocation4 + $0x58] sm:$0xff] %vm1643, %v1638
        %1656 = vst.msk [vmem:[#allocation4 + $0x60] sm:$0xff] %vm1643, %v1639
        %1657 = vst.msk [vmem:[#allocation4 + $0x68] sm:$0xff] %vm1643, %v1640
        %1658 = vst.msk [vmem:[#allocation4 + $0x70] sm:$0xff] %vm1643, %v1641
        %1659 = vst.msk [vmem:[#allocation4 + $0x78] sm:$0xff] %vm1643, %v1642
        %v1660 = vld [vmem:[%s429] sm:$0xff]
        %v1661 = vld [vmem:[%s429 + $0x8] sm:$0xff]
        %v1662 = vld [vmem:[%s429 + $0x10] sm:$0xff]
        %v1663 = vld [vmem:[%s429 + $0x18] sm:$0xff]
        %v1664 = vld [vmem:[%s429 + $0x20] sm:$0xff]
        %v1665 = vld [vmem:[%s429 + $0x28] sm:$0xff]
        %v1666 = vld [vmem:[%s429 + $0x30] sm:$0xff]
        %v1667 = vld [vmem:[%s429 + $0x38] sm:$0xff]
        %v1668 = vld [vmem:[%s429 + $0x40] sm:$0xff]
        %v1669 = vld [vmem:[%s429 + $0x48] sm:$0xff]
        %v1670 = vld [vmem:[%s429 + $0x50] sm:$0xff]
        %v1671 = vld [vmem:[%s429 + $0x58] sm:$0xff]
        %v1672 = vld [vmem:[%s429 + $0x60] sm:$0xff]
        %v1673 = vld [vmem:[%s429 + $0x68] sm:$0xff]
        %v1674 = vld [vmem:[%s429 + $0x70] sm:$0xff]
        %v1675 = vld [vmem:[%s429 + $0x78] sm:$0xff]
        %vm1676 = vcmp.lt.u32.totalorder %v1660, 3865470566
        %vm1677 = vcmp.lt.u32.totalorder %v1661, 3865470566
        %vm1678 = vcmp.lt.u32.totalorder %v1662, 3865470566
        %vm1679 = vcmp.lt.u32.totalorder %v1663, 3865470566
        %vm1680 = vcmp.lt.u32.totalorder %v1664, 3865470566
        %vm1681 = vcmp.lt.u32.totalorder %v1665, 3865470566
        %vm1682 = vcmp.lt.u32.totalorder %v1666, 3865470566
        %vm1683 = vcmp.lt.u32.totalorder %v1667, 3865470566
        %vm1684 = vcmp.lt.u32.totalorder %v1668, 3865470566
        %vm1685 = vcmp.lt.u32.totalorder %v1669, 3865470566
        %vm1686 = vcmp.lt.u32.totalorder %v1670, 3865470566
        %vm1687 = vcmp.lt.u32.totalorder %v1671, 3865470566
        %vm1688 = vcmp.lt.u32.totalorder %v1672, 3865470566
        %vm1689 = vcmp.lt.u32.totalorder %v1673, 3865470566
        %vm1690 = vcmp.lt.u32.totalorder %v1674, 3865470566
        %vm1691 = vcmp.lt.u32.totalorder %v1675, 3865470566
        %v1692 = vmul.f32 %v1532, 1.1111112
        %v1693 = vmul.f32 %v1534, 1.1111112
        %v1694 = vmul.f32 %v1536, 1.1111112
        %v1695 = vmul.f32 %v1538, 1.1111112
        %v1696 = vmul.f32 %v1540, 1.1111112
        %v1697 = vmul.f32 %v1542, 1.1111112
        %v1698 = vmul.f32 %v1544, 1.1111112
        %v1699 = vmul.f32 %v1546, 1.1111112
        %v1700 = vmul.f32 %v1548, 1.1111112
        %v1701 = vmul.f32 %v1550, 1.1111112
        %v1702 = vmul.f32 %v1552, 1.1111112
        %v1703 = vmul.f32 %v1554, 1.1111112
        %v1704 = vmul.f32 %v1556, 1.1111112
        %v1705 = vmul.f32 %v1558, 1.1111112
        %v1706 = vmul.f32 %v1560, 1.1111112
        %v1707 = vmul.f32 %v1562, 1.1111112
        %v1708 = vsel %vm1676, %v1692, 0.0
        %v1709 = vsel %vm1677, %v1693, 0.0
        %v1710 = vsel %vm1678, %v1694, 0.0
        %v1711 = vsel %vm1679, %v1695, 0.0
        %v1712 = vsel %vm1680, %v1696, 0.0
        %v1713 = vsel %vm1681, %v1697, 0.0
        %v1714 = vsel %vm1682, %v1698, 0.0
        %v1715 = vsel %vm1683, %v1699, 0.0
        %v1716 = vsel %vm1684, %v1700, 0.0
        %v1717 = vsel %vm1685, %v1701, 0.0
        %v1718 = vsel %vm1686, %v1702, 0.0
        %v1719 = vsel %vm1687, %v1703, 0.0
        %v1720 = vsel %vm1688, %v1704, 0.0
        %v1721 = vsel %vm1689, %v1705, 0.0
        %v1722 = vsel %vm1690, %v1706, 0.0
        %v1723 = vsel %vm1691, %v1707, 0.0
        %v1724 = vld [vmem:[#allocation5] sm:$0xff]
        %v1725 = vld [vmem:[#allocation5 + $0x8] sm:$0xff]
        %v1726 = vld [vmem:[#allocation5 + $0x10] sm:$0xff]
        %v1727 = vld [vmem:[#allocation5 + $0x18] sm:$0xff]
        %v1728 = vld [vmem:[#allocation5 + $0x20] sm:$0xff]
        %v1729 = vld [vmem:[#allocation5 + $0x28] sm:$0xff]
        %v1730 = vld [vmem:[#allocation5 + $0x30] sm:$0xff]
        %v1731 = vld [vmem:[#allocation5 + $0x38] sm:$0xff]
        %v1732 = vld [vmem:[#allocation5 + $0x40] sm:$0xff]
        %v1733 = vld [vmem:[#allocation5 + $0x48] sm:$0xff]
        %v1734 = vld [vmem:[#allocation5 + $0x50] sm:$0xff]
        %v1735 = vld [vmem:[#allocation5 + $0x58] sm:$0xff]
        %v1736 = vld [vmem:[#allocation5 + $0x60] sm:$0xff]
        %v1737 = vld [vmem:[#allocation5 + $0x68] sm:$0xff]
        %v1738 = vld [vmem:[#allocation5 + $0x70] sm:$0xff]
        %v1739 = vld [vmem:[#allocation5 + $0x78] sm:$0xff]
        %1741 = vset.pattern.permute.xlu0 0
        %1742 = vperm.xlu0 %1741, %v1404
        %v1743 = vpop.permute.xlu0 %1742
        %1746 = vset.pattern.permute.xlu0 0
        %1747 = vperm.xlu0 %1746, %v1406
        %v1748 = vpop.permute.xlu0 %1747
        %1751 = vset.pattern.permute.xlu0 0
        %1752 = vperm.xlu0 %1751, %v1408
        %v1753 = vpop.permute.xlu0 %1752
        %1756 = vset.pattern.permute.xlu0 0
        %1757 = vperm.xlu0 %1756, %v1410
        %v1758 = vpop.permute.xlu0 %1757
        %1761 = vset.pattern.permute.xlu0 0
        %1762 = vperm.xlu0 %1761, %v1412
        %v1763 = vpop.permute.xlu0 %1762
        %1766 = vset.pattern.permute.xlu0 0
        %1767 = vperm.xlu0 %1766, %v1414
        %v1768 = vpop.permute.xlu0 %1767
        %1771 = vset.pattern.permute.xlu0 0
        %1772 = vperm.xlu0 %1771, %v1416
        %v1773 = vpop.permute.xlu0 %1772
        %1776 = vset.pattern.permute.xlu0 0
        %1777 = vperm.xlu0 %1776, %v1418
        %v1778 = vpop.permute.xlu0 %1777
        %1781 = vset.pattern.permute.xlu0 0
        %1782 = vperm.xlu0 %1781, %v1420
        %v1783 = vpop.permute.xlu0 %1782
        %1786 = vset.pattern.permute.xlu0 0
        %1787 = vperm.xlu0 %1786, %v1422
        %v1788 = vpop.permute.xlu0 %1787
        %1791 = vset.pattern.permute.xlu0 0
        %1792 = vperm.xlu0 %1791, %v1424
        %v1793 = vpop.permute.xlu0 %1792
        %1796 = vset.pattern.permute.xlu0 0
        %1797 = vperm.xlu0 %1796, %v1426
        %v1798 = vpop.permute.xlu0 %1797
        %1801 = vset.pattern.permute.xlu0 0
        %1802 = vperm.xlu0 %1801, %v1428
        %v1803 = vpop.permute.xlu0 %1802
        %1806 = vset.pattern.permute.xlu0 0
        %1807 = vperm.xlu0 %1806, %v1430
        %v1808 = vpop.permute.xlu0 %1807
        %1811 = vset.pattern.permute.xlu0 0
        %1812 = vperm.xlu0 %1811, %v1432
        %v1813 = vpop.permute.xlu0 %1812
        %1816 = vset.pattern.permute.xlu0 0
        %1817 = vperm.xlu0 %1816, %v1434
        %v1818 = vpop.permute.xlu0 %1817
        %v1820 = vmul.f32 %v1743, %v1724
        %v1821 = vmul.f32 %v1748, %v1725
        %v1822 = vmul.f32 %v1753, %v1726
        %v1823 = vmul.f32 %v1758, %v1727
        %v1824 = vmul.f32 %v1763, %v1728
        %v1825 = vmul.f32 %v1768, %v1729
        %v1826 = vmul.f32 %v1773, %v1730
        %v1827 = vmul.f32 %v1778, %v1731
        %v1828 = vmul.f32 %v1783, %v1732
        %v1829 = vmul.f32 %v1788, %v1733
        %v1830 = vmul.f32 %v1793, %v1734
        %v1831 = vmul.f32 %v1798, %v1735
        %v1832 = vmul.f32 %v1803, %v1736
        %v1833 = vmul.f32 %v1808, %v1737
        %v1834 = vmul.f32 %v1813, %v1738
        %v1835 = vmul.f32 %v1818, %v1739
        %1836 = vmatprep.subr.mxu0 0.0
        %1837 = vmatpush1.msra.mxu0 %v955
        %1838 = vmatprep.subr.mxu0 0.0
        %1839 = vmatpush1.msra.mxu0 %v960
        %1840 = vmatprep.subr.mxu0 0.0
        %1841 = vmatpush1.msra.mxu0 %v965
        %1842 = vmatprep.subr.mxu0 0.0
        %1843 = vmatpush1.msra.mxu0 %v970
        %1844 = vmatprep.subr.mxu0 0.0
        %1845 = vmatpush1.msra.mxu0 %v975
        %1846 = vmatprep.subr.mxu0 0.0
        %1847 = vmatpush1.msra.mxu0 %v980
        %1848 = vmatprep.subr.mxu0 0.0
        %1849 = vmatpush1.msra.mxu0 %v985
        %1850 = vmatprep.subr.mxu0 0.0
        %1851 = vmatpush1.msra.mxu0 %v990
        %1852 = vmatprep.subr.mxu0 0.0
        %1853 = vmatpush1.msra.mxu0 %v995
        %1854 = vmatprep.subr.mxu0 0.0
        %1855 = vmatpush1.msra.mxu0 %v1000
        %1856 = vmatprep.subr.mxu0 0.0
        %1857 = vmatpush1.msra.mxu0 %v1005
        %1858 = vmatprep.subr.mxu0 0.0
        %1859 = vmatpush1.msra.mxu0 %v1010
        %1860 = vmatprep.subr.mxu0 0.0
        %1861 = vmatpush1.msra.mxu0 %v1015
        %1862 = vmatprep.subr.mxu0 0.0
        %1863 = vmatpush1.msra.mxu0 %v1020
        %1864 = vmatprep.subr.mxu0 0.0
        %1865 = vmatpush1.msra.mxu0 %v1025
        %1866 = vmatprep.subr.mxu0 0.0
        %1867 = vmatpush1.msra.mxu0 %v1030
        %1868 = vmatprep.subr.mxu0 0.0
        %1869 = vmatpush1.msra.mxu0 0.0
        %1870 = vmatprep.subr.mxu0 0.0
        %1871 = vmatpush1.msra.mxu0 0.0
        %1872 = vmatprep.subr.mxu0 0.0
        %1873 = vmatpush1.msra.mxu0 0.0
        %1874 = vmatprep.subr.mxu0 0.0
        %1875 = vmatpush1.msra.mxu0 0.0
        %1876 = vmatprep.subr.mxu0 0.0
        %1877 = vmatpush1.msra.mxu0 0.0
        %1878 = vmatprep.subr.mxu0 0.0
        %1879 = vmatpush1.msra.mxu0 0.0
        %1880 = vmatprep.subr.mxu0 0.0
        %1881 = vmatpush1.msra.mxu0 0.0
        %1882 = vmatprep.subr.mxu0 0.0
        %1883 = vmatpush1.msra.mxu0 0.0
        %1884 = vmatprep.subr.mxu0 0.0
        %1885 = vmatpush1.msra.mxu0 0.0
        %1886 = vmatprep.subr.mxu0 0.0
        %1887 = vmatpush1.msra.mxu0 0.0
        %1888 = vmatprep.subr.mxu0 0.0
        %1889 = vmatpush1.msra.mxu0 0.0
        %1890 = vmatprep.subr.mxu0 0.0
        %1891 = vmatpush1.msra.mxu0 0.0
        %1892 = vmatprep.subr.mxu0 0.0
        %1893 = vmatpush1.msra.mxu0 0.0
        %1894 = vmatprep.subr.mxu0 0.0
        %1895 = vmatpush1.msra.mxu0 0.0
        %1896 = vmatprep.subr.mxu0 0.0
        %1897 = vmatpush1.msra.mxu0 0.0
        %1898 = vmatprep.subr.mxu0 0.0
        %1899 = vmatpush1.msra.mxu0 0.0
        %1900 = vmatprep.mubr.f32.mxu0 0.0
        %1901 = vmatmul.mubr.f32.gmra.mrb[0].mxu0 %v1708
        %v1902 = vpop.f32.mrb[0].mxu0
        %v1903 = vadd.f32 0.0, %v1902
        %v1904 = vpop.f32.mrb[0].mxu0
        %1905 = vmatprep.mubr.f32.mxu0 0.0
        %1906 = vmatmul.mubr.f32.gmra.mrb[0].mxu0 %v1709
        %v1907 = vpop.f32.mrb[0].mxu0
        %v1908 = vadd.f32 0.0, %v1907
        %v1909 = vpop.f32.mrb[0].mxu0
        %1910 = vmatprep.mubr.f32.mxu0 0.0
        %1911 = vmatmul.mubr.f32.gmra.mrb[0].mxu0 %v1710
        %v1912 = vpop.f32.mrb[0].mxu0
        %v1913 = vadd.f32 0.0, %v1912
        %v1914 = vpop.f32.mrb[0].mxu0
        %1915 = vmatprep.mubr.f32.mxu0 0.0
        %1916 = vmatmul.mubr.f32.gmra.mrb[0].mxu0 %v1711
        %v1917 = vpop.f32.mrb[0].mxu0
        %v1918 = vadd.f32 0.0, %v1917
        %v1919 = vpop.f32.mrb[0].mxu0
        %1920 = vmatprep.mubr.f32.mxu0 0.0
        %1921 = vmatmul.mubr.f32.gmra.mrb[0].mxu0 %v1712
        %v1922 = vpop.f32.mrb[0].mxu0
        %v1923 = vadd.f32 0.0, %v1922
        %v1924 = vpop.f32.mrb[0].mxu0
        %1925 = vmatprep.mubr.f32.mxu0 0.0
        %1926 = vmatmul.mubr.f32.gmra.mrb[0].mxu0 %v1713
        %v1927 = vpop.f32.mrb[0].mxu0
        %v1928 = vadd.f32 0.0, %v1927
        %v1929 = vpop.f32.mrb[0].mxu0
        %1930 = vmatprep.mubr.f32.mxu0 0.0
        %1931 = vmatmul.mubr.f32.gmra.mrb[0].mxu0 %v1714
        %v1932 = vpop.f32.mrb[0].mxu0
        %v1933 = vadd.f32 0.0, %v1932
        %v1934 = vpop.f32.mrb[0].mxu0
        %1935 = vmatprep.mubr.f32.mxu0 0.0
        %1936 = vmatmul.mubr.f32.gmra.mrb[0].mxu0 %v1715
        %v1937 = vpop.f32.mrb[0].mxu0
        %v1938 = vadd.f32 0.0, %v1937
        %v1939 = vpop.f32.mrb[0].mxu0
        %1940 = vmatprep.mubr.f32.mxu0 0.0
        %1941 = vmatmul.mubr.f32.gmra.mrb[0].mxu0 %v1716
        %v1942 = vpop.f32.mrb[0].mxu0
        %v1943 = vadd.f32 0.0, %v1942
        %v1944 = vpop.f32.mrb[0].mxu0
        %1945 = vmatprep.mubr.f32.mxu0 0.0
        %1946 = vmatmul.mubr.f32.gmra.mrb[0].mxu0 %v1717
        %v1947 = vpop.f32.mrb[0].mxu0
        %v1948 = vadd.f32 0.0, %v1947
        %v1949 = vpop.f32.mrb[0].mxu0
        %1950 = vmatprep.mubr.f32.mxu0 0.0
        %1951 = vmatmul.mubr.f32.gmra.mrb[0].mxu0 %v1718
        %v1952 = vpop.f32.mrb[0].mxu0
        %v1953 = vadd.f32 0.0, %v1952
        %v1954 = vpop.f32.mrb[0].mxu0
        %1955 = vmatprep.mubr.f32.mxu0 0.0
        %1956 = vmatmul.mubr.f32.gmra.mrb[0].mxu0 %v1719
        %v1957 = vpop.f32.mrb[0].mxu0
        %v1958 = vadd.f32 0.0, %v1957
        %v1959 = vpop.f32.mrb[0].mxu0
        %1960 = vmatprep.mubr.f32.mxu0 0.0
        %1961 = vmatmul.mubr.f32.gmra.mrb[0].mxu0 %v1720
        %v1962 = vpop.f32.mrb[0].mxu0
        %v1963 = vadd.f32 0.0, %v1962
        %v1964 = vpop.f32.mrb[0].mxu0
        %1965 = vmatprep.mubr.f32.mxu0 0.0
        %1966 = vmatmul.mubr.f32.gmra.mrb[0].mxu0 %v1721
        %v1967 = vpop.f32.mrb[0].mxu0
        %v1968 = vadd.f32 0.0, %v1967
        %v1969 = vpop.f32.mrb[0].mxu0
        %1970 = vmatprep.mubr.f32.mxu0 0.0
        %1971 = vmatmul.mubr.f32.gmra.mrb[0].mxu0 %v1722
        %v1972 = vpop.f32.mrb[0].mxu0
        %v1973 = vadd.f32 0.0, %v1972
        %v1974 = vpop.f32.mrb[0].mxu0
        %1975 = vmatprep.mubr.f32.mxu0 0.0
        %1976 = vmatmul.mubr.f32.gmra.mrb[0].mxu0 %v1723
        %v1977 = vpop.f32.mrb[0].mxu0
        %v1978 = vadd.f32 0.0, %v1977
        %v1979 = vpop.f32.mrb[0].mxu0
        %1980 = vdwg.mxu0
        %v1981 = vadd.f32 %v1820, %v1903
        %v1982 = vadd.f32 %v1821, %v1908
        %v1983 = vadd.f32 %v1822, %v1913
        %v1984 = vadd.f32 %v1823, %v1918
        %v1985 = vadd.f32 %v1824, %v1923
        %v1986 = vadd.f32 %v1825, %v1928
        %v1987 = vadd.f32 %v1826, %v1933
        %v1988 = vadd.f32 %v1827, %v1938
        %v1989 = vadd.f32 %v1828, %v1943
        %v1990 = vadd.f32 %v1829, %v1948
        %v1991 = vadd.f32 %v1830, %v1953
        %v1992 = vadd.f32 %v1831, %v1958
        %v1993 = vadd.f32 %v1832, %v1963
        %v1994 = vadd.f32 %v1833, %v1968
        %v1995 = vadd.f32 %v1834, %v1973
        %v1996 = vadd.f32 %v1835, %v1978
        %1997 = vst.msk [vmem:[#allocation5] sm:$0xff] %vm839, %v1981
        %1998 = vst.msk [vmem:[#allocation5 + $0x8] sm:$0xff] %vm839, %v1982
        %1999 = vst.msk [vmem:[#allocation5 + $0x10] sm:$0xff] %vm839, %v1983
        %2000 = vst.msk [vmem:[#allocation5 + $0x18] sm:$0xff] %vm839, %v1984
        %2001 = vst.msk [vmem:[#allocation5 + $0x20] sm:$0xff] %vm839, %v1985
        %2002 = vst.msk [vmem:[#allocation5 + $0x28] sm:$0xff] %vm839, %v1986
        %2003 = vst.msk [vmem:[#allocation5 + $0x30] sm:$0xff] %vm839, %v1987
        %2004 = vst.msk [vmem:[#allocation5 + $0x38] sm:$0xff] %vm839, %v1988
        %2005 = vst.msk [vmem:[#allocation5 + $0x40] sm:$0xff] %vm839, %v1989
        %2006 = vst.msk [vmem:[#allocation5 + $0x48] sm:$0xff] %vm839, %v1990
        %2007 = vst.msk [vmem:[#allocation5 + $0x50] sm:$0xff] %vm839, %v1991
        %2008 = vst.msk [vmem:[#allocation5 + $0x58] sm:$0xff] %vm839, %v1992
        %2009 = vst.msk [vmem:[#allocation5 + $0x60] sm:$0xff] %vm839, %v1993
        %2010 = vst.msk [vmem:[#allocation5 + $0x68] sm:$0xff] %vm839, %v1994
        %2011 = vst.msk [vmem:[#allocation5 + $0x70] sm:$0xff] %vm839, %v1995
        %2012 = vst.msk [vmem:[#allocation5 + $0x78] sm:$0xff] %vm839, %v1996
        %2013 = vst.msk [vmem:[#allocation3] sm:$0xff] %vm1643, %v1371
        %2014 = vst.msk [vmem:[#allocation3 + $0x8] sm:$0xff] %vm1643, %v1372
        %2015 = vst.msk [vmem:[#allocation3 + $0x10] sm:$0xff] %vm1643, %v1373
        %2016 = vst.msk [vmem:[#allocation3 + $0x18] sm:$0xff] %vm1643, %v1374
        %2017 = vst.msk [vmem:[#allocation3 + $0x20] sm:$0xff] %vm1643, %v1375
        %2018 = vst.msk [vmem:[#allocation3 + $0x28] sm:$0xff] %vm1643, %v1376
        %2019 = vst.msk [vmem:[#allocation3 + $0x30] sm:$0xff] %vm1643, %v1377
        %2020 = vst.msk [vmem:[#allocation3 + $0x38] sm:$0xff] %vm1643, %v1378
        %2021 = vst.msk [vmem:[#allocation3 + $0x40] sm:$0xff] %vm1643, %v1379
        %2022 = vst.msk [vmem:[#allocation3 + $0x48] sm:$0xff] %vm1643, %v1380
        %2023 = vst.msk [vmem:[#allocation3 + $0x50] sm:$0xff] %vm1643, %v1381
        %2024 = vst.msk [vmem:[#allocation3 + $0x58] sm:$0xff] %vm1643, %v1382
        %2025 = vst.msk [vmem:[#allocation3 + $0x60] sm:$0xff] %vm1643, %v1383
        %2026 = vst.msk [vmem:[#allocation3 + $0x68] sm:$0xff] %vm1643, %v1384
        %2027 = vst.msk [vmem:[#allocation3 + $0x70] sm:$0xff] %vm1643, %v1385
        %2028 = vst.msk [vmem:[#allocation3 + $0x78] sm:$0xff] %vm1643, %v1386
        %p2029 = scmp.eq.s32.totalorder %s27, 1
        // Predicated region
        $region95: #{tpu_custom_call.1} parent=85 // pred_check
          %p2030 = pneg %p2029
        $region96: #{tpu_custom_call.1} parent=85 // pred_check_branch
          %2032 = sbr.rel (%p2030) target = $region98
        $region97: #{tpu_custom_call.1} parent=85 // pred_region
          %v2033 = vld [vmem:[#allocation5] sm:$0xff]
          %v2034 = vld [vmem:[#allocation5 + $0x8] sm:$0xff]
          %v2035 = vld [vmem:[#allocation5 + $0x10] sm:$0xff]
          %v2036 = vld [vmem:[#allocation5 + $0x18] sm:$0xff]
          %v2037 = vld [vmem:[#allocation5 + $0x20] sm:$0xff]
          %v2038 = vld [vmem:[#allocation5 + $0x28] sm:$0xff]
          %v2039 = vld [vmem:[#allocation5 + $0x30] sm:$0xff]
          %v2040 = vld [vmem:[#allocation5 + $0x38] sm:$0xff]
          %v2041 = vld [vmem:[#allocation5 + $0x40] sm:$0xff]
          %v2042 = vld [vmem:[#allocation5 + $0x48] sm:$0xff]
          %v2043 = vld [vmem:[#allocation5 + $0x50] sm:$0xff]
          %v2044 = vld [vmem:[#allocation5 + $0x58] sm:$0xff]
          %v2045 = vld [vmem:[#allocation5 + $0x60] sm:$0xff]
          %v2046 = vld [vmem:[#allocation5 + $0x68] sm:$0xff]
          %v2047 = vld [vmem:[#allocation5 + $0x70] sm:$0xff]
          %v2048 = vld [vmem:[#allocation5 + $0x78] sm:$0xff]
          %v2049 = vld [vmem:[#allocation4] sm:$0xff]
          %v2050 = vld [vmem:[#allocation4 + $0x8] sm:$0xff]
          %v2051 = vld [vmem:[#allocation4 + $0x10] sm:$0xff]
          %v2052 = vld [vmem:[#allocation4 + $0x18] sm:$0xff]
          %v2053 = vld [vmem:[#allocation4 + $0x20] sm:$0xff]
          %v2054 = vld [vmem:[#allocation4 + $0x28] sm:$0xff]
          %v2055 = vld [vmem:[#allocation4 + $0x30] sm:$0xff]
          %v2056 = vld [vmem:[#allocation4 + $0x38] sm:$0xff]
          %v2057 = vld [vmem:[#allocation4 + $0x40] sm:$0xff]
          %v2058 = vld [vmem:[#allocation4 + $0x48] sm:$0xff]
          %v2059 = vld [vmem:[#allocation4 + $0x50] sm:$0xff]
          %v2060 = vld [vmem:[#allocation4 + $0x58] sm:$0xff]
          %v2061 = vld [vmem:[#allocation4 + $0x60] sm:$0xff]
          %v2062 = vld [vmem:[#allocation4 + $0x68] sm:$0xff]
          %v2063 = vld [vmem:[#allocation4 + $0x70] sm:$0xff]
          %v2064 = vld [vmem:[#allocation4 + $0x78] sm:$0xff]
          %v2065 = vrcp.pop %v2049
          %v2066 = vmul.f32 1.0, %v2065
          %v2067 = vrcp.pop %v2050
          %v2068 = vmul.f32 1.0, %v2067
          %v2069 = vrcp.pop %v2051
          %v2070 = vmul.f32 1.0, %v2069
          %v2071 = vrcp.pop %v2052
          %v2072 = vmul.f32 1.0, %v2071
          %v2073 = vrcp.pop %v2053
          %v2074 = vmul.f32 1.0, %v2073
          %v2075 = vrcp.pop %v2054
          %v2076 = vmul.f32 1.0, %v2075
          %v2077 = vrcp.pop %v2055
          %v2078 = vmul.f32 1.0, %v2077
          %v2079 = vrcp.pop %v2056
          %v2080 = vmul.f32 1.0, %v2079
          %v2081 = vrcp.pop %v2057
          %v2082 = vmul.f32 1.0, %v2081
          %v2083 = vrcp.pop %v2058
          %v2084 = vmul.f32 1.0, %v2083
          %v2085 = vrcp.pop %v2059
          %v2086 = vmul.f32 1.0, %v2085
          %v2087 = vrcp.pop %v2060
          %v2088 = vmul.f32 1.0, %v2087
          %v2089 = vrcp.pop %v2061
          %v2090 = vmul.f32 1.0, %v2089
          %v2091 = vrcp.pop %v2062
          %v2092 = vmul.f32 1.0, %v2091
          %v2093 = vrcp.pop %v2063
          %v2094 = vmul.f32 1.0, %v2093
          %v2095 = vrcp.pop %v2064
          %v2096 = vmul.f32 1.0, %v2095
          %2098 = vset.pattern.permute.xlu0 0
          %2099 = vperm.xlu0 %2098, %v2066
          %v2100 = vpop.permute.xlu0 %2099
          %2103 = vset.pattern.permute.xlu0 0
          %2104 = vperm.xlu0 %2103, %v2068
          %v2105 = vpop.permute.xlu0 %2104
          %2108 = vset.pattern.permute.xlu0 0
          %2109 = vperm.xlu0 %2108, %v2070
          %v2110 = vpop.permute.xlu0 %2109
          %2113 = vset.pattern.permute.xlu0 0
          %2114 = vperm.xlu0 %2113, %v2072
          %v2115 = vpop.permute.xlu0 %2114
          %2118 = vset.pattern.permute.xlu0 0
          %2119 = vperm.xlu0 %2118, %v2074
          %v2120 = vpop.permute.xlu0 %2119
          %2123 = vset.pattern.permute.xlu0 0
          %2124 = vperm.xlu0 %2123, %v2076
          %v2125 = vpop.permute.xlu0 %2124
          %2128 = vset.pattern.permute.xlu0 0
          %2129 = vperm.xlu0 %2128, %v2078
          %v2130 = vpop.permute.xlu0 %2129
          %2133 = vset.pattern.permute.xlu0 0
          %2134 = vperm.xlu0 %2133, %v2080
          %v2135 = vpop.permute.xlu0 %2134
          %2138 = vset.pattern.permute.xlu0 0
          %2139 = vperm.xlu0 %2138, %v2082
          %v2140 = vpop.permute.xlu0 %2139
          %2143 = vset.pattern.permute.xlu0 0
          %2144 = vperm.xlu0 %2143, %v2084
          %v2145 = vpop.permute.xlu0 %2144
          %2148 = vset.pattern.permute.xlu0 0
          %2149 = vperm.xlu0 %2148, %v2086
          %v2150 = vpop.permute.xlu0 %2149
          %2153 = vset.pattern.permute.xlu0 0
          %2154 = vperm.xlu0 %2153, %v2088
          %v2155 = vpop.permute.xlu0 %2154
          %2158 = vset.pattern.permute.xlu0 0
          %2159 = vperm.xlu0 %2158, %v2090
          %v2160 = vpop.permute.xlu0 %2159
          %2163 = vset.pattern.permute.xlu0 0
          %2164 = vperm.xlu0 %2163, %v2092
          %v2165 = vpop.permute.xlu0 %2164
          %2168 = vset.pattern.permute.xlu0 0
          %2169 = vperm.xlu0 %2168, %v2094
          %v2170 = vpop.permute.xlu0 %2169
          %2173 = vset.pattern.permute.xlu0 0
          %2174 = vperm.xlu0 %2173, %v2096
          %v2175 = vpop.permute.xlu0 %2174
          %v2177 = vmul.f32 %v2033, %v2100
          %v2178 = vmul.f32 %v2034, %v2105
          %v2179 = vmul.f32 %v2035, %v2110
          %v2180 = vmul.f32 %v2036, %v2115
          %v2181 = vmul.f32 %v2037, %v2120
          %v2182 = vmul.f32 %v2038, %v2125
          %v2183 = vmul.f32 %v2039, %v2130
          %v2184 = vmul.f32 %v2040, %v2135
          %v2185 = vmul.f32 %v2041, %v2140
          %v2186 = vmul.f32 %v2042, %v2145
          %v2187 = vmul.f32 %v2043, %v2150
          %v2188 = vmul.f32 %v2044, %v2155
          %v2189 = vmul.f32 %v2045, %v2160
          %v2190 = vmul.f32 %v2046, %v2165
          %v2191 = vmul.f32 %v2047, %v2170
          %v2192 = vmul.f32 %v2048, %v2175
          %s2193 = sld [smem:[#allocation6]]
          %v2194 = vstv %s2193
          %v2195 = vmul.f32 %v2194, %v2177
          %v2196 = vmul.f32 %v2194, %v2178
          %v2197 = vmul.f32 %v2194, %v2179
          %v2198 = vmul.f32 %v2194, %v2180
          %v2199 = vmul.f32 %v2194, %v2181
          %v2200 = vmul.f32 %v2194, %v2182
          %v2201 = vmul.f32 %v2194, %v2183
          %v2202 = vmul.f32 %v2194, %v2184
          %v2203 = vmul.f32 %v2194, %v2185
          %v2204 = vmul.f32 %v2194, %v2186
          %v2205 = vmul.f32 %v2194, %v2187
          %v2206 = vmul.f32 %v2194, %v2188
          %v2207 = vmul.f32 %v2194, %v2189
          %v2208 = vmul.f32 %v2194, %v2190
          %v2209 = vmul.f32 %v2194, %v2191
          %v2210 = vmul.f32 %v2194, %v2192
          %v2211 = vld [vmem:[%s490] sm:$0xff]
          %v2212 = vld [vmem:[%s490 + $0x8] sm:$0xff]
          %v2213 = vld [vmem:[%s490 + $0x10] sm:$0xff]
          %v2214 = vld [vmem:[%s490 + $0x18] sm:$0xff]
          %v2215 = vld [vmem:[%s490 + $0x20] sm:$0xff]
          %v2216 = vld [vmem:[%s490 + $0x28] sm:$0xff]
          %v2217 = vld [vmem:[%s490 + $0x30] sm:$0xff]
          %v2218 = vld [vmem:[%s490 + $0x38] sm:$0xff]
          %v2219 = vld [vmem:[%s490 + $0x40] sm:$0xff]
          %v2220 = vld [vmem:[%s490 + $0x48] sm:$0xff]
          %v2221 = vld [vmem:[%s490 + $0x50] sm:$0xff]
          %v2222 = vld [vmem:[%s490 + $0x58] sm:$0xff]
          %v2223 = vld [vmem:[%s490 + $0x60] sm:$0xff]
          %v2224 = vld [vmem:[%s490 + $0x68] sm:$0xff]
          %v2225 = vld [vmem:[%s490 + $0x70] sm:$0xff]
          %v2226 = vld [vmem:[%s490 + $0x78] sm:$0xff]
          %v2227 = vadd.f32 %v2195, %v2211
          %v2228 = vadd.f32 %v2196, %v2212
          %v2229 = vadd.f32 %v2197, %v2213
          %v2230 = vadd.f32 %v2198, %v2214
          %v2231 = vadd.f32 %v2199, %v2215
          %v2232 = vadd.f32 %v2200, %v2216
          %v2233 = vadd.f32 %v2201, %v2217
          %v2234 = vadd.f32 %v2202, %v2218
          %v2235 = vadd.f32 %v2203, %v2219
          %v2236 = vadd.f32 %v2204, %v2220
          %v2237 = vadd.f32 %v2205, %v2221
          %v2238 = vadd.f32 %v2206, %v2222
          %v2239 = vadd.f32 %v2207, %v2223
          %v2240 = vadd.f32 %v2208, %v2224
          %v2241 = vadd.f32 %v2209, %v2225
          %v2242 = vadd.f32 %v2210, %v2226
          %2243 = vst.msk [vmem:[%s511] sm:$0xff] %vm839, %v2227
          %2244 = vst.msk [vmem:[%s511 + $0x8] sm:$0xff] %vm839, %v2228
          %2245 = vst.msk [vmem:[%s511 + $0x10] sm:$0xff] %vm839, %v2229
          %2246 = vst.msk [vmem:[%s511 + $0x18] sm:$0xff] %vm839, %v2230
          %2247 = vst.msk [vmem:[%s511 + $0x20] sm:$0xff] %vm839, %v2231
          %2248 = vst.msk [vmem:[%s511 + $0x28] sm:$0xff] %vm839, %v2232
          %2249 = vst.msk [vmem:[%s511 + $0x30] sm:$0xff] %vm839, %v2233
          %2250 = vst.msk [vmem:[%s511 + $0x38] sm:$0xff] %vm839, %v2234
          %2251 = vst.msk [vmem:[%s511 + $0x40] sm:$0xff] %vm839, %v2235
          %2252 = vst.msk [vmem:[%s511 + $0x48] sm:$0xff] %vm839, %v2236
          %2253 = vst.msk [vmem:[%s511 + $0x50] sm:$0xff] %vm839, %v2237
          %2254 = vst.msk [vmem:[%s511 + $0x58] sm:$0xff] %vm839, %v2238
          %2255 = vst.msk [vmem:[%s511 + $0x60] sm:$0xff] %vm839, %v2239
          %2256 = vst.msk [vmem:[%s511 + $0x68] sm:$0xff] %vm839, %v2240
          %2257 = vst.msk [vmem:[%s511 + $0x70] sm:$0xff] %vm839, %v2241
          %2258 = vst.msk [vmem:[%s511 + $0x78] sm:$0xff] %vm839, %v2242
        $region98: #{tpu_custom_call.1} parent=85 // pred_fallthru
          _
        %s2259 = smul.u32 16, %s26
        %p2260 = scmp.lt.s32.totalorder %s25, 1
        %s2261 = scalar_select %p2260, %s25, 1
        %p2262 = scmp.lt.s32.totalorder %s2259, 31
        %s2263 = scalar_select %p2262, %s2259, 31
        %s2264 = smul.addr %s2261, 32
        %s2265 = sadd.s32 %s2263, %s2264
        %s2266 = smul.addr %s2265, 8
        %s2267 = scalar_lea.vmem %s8, %s2266
        // Predicated region
        $region99: #{tpu_custom_call.1} parent=85 // pred_check
          %p2268 = pneg %p250
        $region100: #{tpu_custom_call.1} parent=85 // pred_check_branch
          %2270 = sbr.rel (%p2268) target = $region102
        $region101: #{tpu_custom_call.1} parent=85 // pred_region
          %s2271 = smul.u32 16, %s26
        $region102: #{tpu_custom_call.1} parent=85 // pred_fallthru
          _
      $region86: #{tpu_custom_call.1} parent=5 // pred_fallthru
        _
      %p2272 = scmp.le.s32.totalorder 2, %s15
      // Predicated region
      $region103: #{tpu_custom_call.1} parent=5 // pred_check
        %p2273 = pneg %p2272
      $region104: #{tpu_custom_call.1} parent=5 // pred_check_branch
        %2275 = sbr.rel (%p2273) target = $region106
      $region105: #{tpu_custom_call.1} parent=5 // pred_region
        %s2276 = ssub.s32 %s15, 2
        // Predicated region
        $region107: #{tpu_custom_call.1} parent=105 // pred_check
          %p2277 = pneg %p256
        $region108: #{tpu_custom_call.1} parent=105 // pred_check_branch
          %2279 = sbr.rel (%p2277) target = $region110
        $region109: #{tpu_custom_call.1} parent=105 // pred_region
          %s2280 = smul.u32 16, %s29
          %p2281 = scmp.lt.s32.totalorder %s28, 1
          %s2282 = scalar_select %p2281, %s28, 1
          %p2283 = scmp.lt.s32.totalorder %s2280, 31
          %s2284 = scalar_select %p2283, %s2280, 31
          %s2285 = smul.addr %s2282, 32
          %s2286 = sadd.s32 %s2284, %s2285
          %s2287 = smul.addr %s2286, 8
          %s2288 = scalar_lea.vmem %s8, %s2287
        $region110: #{tpu_custom_call.1} parent=105 // pred_fallthru
          _
      $region106: #{tpu_custom_call.1} parent=5 // pred_fallthru
        _
    $region6: #{tpu_custom_call.1} parent=1 // loop_footer
      %s19 = sadd.s32 1, %s15
    $region7: #{tpu_custom_call.1} parent=1 // loop_footer_branch
      %14 = sbr.rel target = $region3
    $region8: #{tpu_custom_call.1} parent=1 // loop_exit
      _

</llo_original>
